<compile_context>
chip_gen: v7x
topology: tpu7x:2x2x1
jax: 0.10.0
libtpu: 0.0.40
codegen_flags: <defaults>
</compile_context>

<pallas_src>
import functools

import jax
import jax.numpy as jnp
from jax import lax
from jax.experimental import pallas as pl
from jax.experimental.pallas import tpu as pltpu

BN_EPS = 1e-5


def _round_up(x, m):
    return ((x + m - 1) // m) * m


def _pad2(a, rows, cols):
    if a.shape == (rows, cols):
        return a
    return jnp.pad(a, ((0, rows - a.shape[0]), (0, cols - a.shape[1])))


def _vmem_budget_bytes():
    """~75% of per-core VMEM capacity (fallback 64 MiB = v7x, the smallest)."""
    cap = 64 * 1024 * 1024
    try:
        cap = int(pltpu.get_tpu_info().vmem_capacity_bytes) or cap
    except Exception:
        pass
    return (3 * cap) // 4


def _pinned_spec(shape, index_map):
    """Grid-invariant block: single-buffered (a second pipeline buffer is pure VMEM waste)."""
    return pl.BlockSpec(shape, index_map, pipeline_mode=pl.Buffered(1))


# ---------------------------------------------------------------------------
# Fused kernel: grid = (phase, batch tile).  Phase 0: h = x @ W1 + b1 into a VMEM
# scratch + shifted BN sums (+ fold to scale/shift on the last tile).  Phase 1:
# BN + ReLU + second matmul from the resident h.  No h HBM round trip.
# ---------------------------------------------------------------------------
def _fused_kernel(x_ref, w1_ref, b1_ref, gamma_ref, beta_ref, w2_ref, b2_ref,
                  o_ref, h_vmem, s1_sc, s2_sc, scale_sc, shift_sc,
                  *, tile_n, n_valid):
    phase = pl.program_id(0)
    i = pl.program_id(1)
    n_tiles = pl.num_programs(1)
    row0 = pl.multiple_of(i * tile_n, 8)

    @pl.when(phase == 0)
    def _pass1():
        b1 = b1_ref[...]                                             # (1, Dh) f32
        h = jnp.dot(x_ref[...], w1_ref[...],
                    preferred_element_type=jnp.float32) + b1         # (tile_n, Dh) f32
        h_vmem[pl.ds(row0, tile_n), :] = h.astype(h_vmem.dtype)      # stays in VMEM

        @pl.when(i == 0)
        def _():
            s1_sc[...] = jnp.zeros_like(s1_sc)
            s2_sc[...] = jnp.zeros_like(s2_sc)

        # Shifted stats: zero-padded batch rows give h == b1 exactly -> contribute 0.
        d = h - b1
        s1_sc[...] += jnp.sum(d, axis=0, keepdims=True)
        s2_sc[...] += jnp.sum(d * d, axis=0, keepdims=True)

        @pl.when(i == n_tiles - 1)
        def _():
            inv_n = jnp.float32(1.0 / n_valid)
            m = s1_sc[...] * inv_n
            var = jnp.maximum(s2_sc[...] * inv_n - m * m, 0.0)       # biased variance
            scale = gamma_ref[...] * lax.rsqrt(var + jnp.float32(BN_EPS))
            scale_sc[...] = scale
            shift_sc[...] = beta_ref[...] - (b1 + m) * scale

    @pl.when(phase == 1)
    def _pass2():
        h = h_vmem[pl.ds(row0, tile_n), :].astype(jnp.float32)
        r = jnp.maximum(h * scale_sc[...] + shift_sc[...], 0.0)      # BN + ReLU
        out = jnp.dot(r.astype(w2_ref.dtype), w2_ref[...],
                      preferred_element_type=jnp.float32) + b2_ref[...]
        o_ref[...] = out.astype(o_ref.dtype)


# ---------------------------------------------------------------------------
# Streaming fallback (h too big for VMEM): two pallas_calls with h in HBM (compute
# dtype).  Phase 1: h + shifted BN sums.  Phase 2: BN + ReLU + second matmul using a
# precomputed per-column scale/shift.
# ---------------------------------------------------------------------------
def _hidden_stats_kernel(x_ref, w1_ref, b1_ref, h_ref, s1_ref, s2_ref):
    b1 = b1_ref[...]
    h = jnp.dot(x_ref[...], w1_ref[...], preferred_element_type=jnp.float32) + b1
    h_ref[...] = h.astype(h_ref.dtype)         # bf16 store: halves the h round trip

    @pl.when(pl.program_id(0) == 0)
    def _():
        s1_ref[...] = jnp.zeros_like(s1_ref)
        s2_ref[...] = jnp.zeros_like(s2_ref)

    d = h - b1                                  # stats from the pre-cast f32 h
    s1_ref[...] += jnp.sum(d, axis=0, keepdims=True)
    s2_ref[...] += jnp.sum(d * d, axis=0, keepdims=True)


def _bn_relu_out_kernel(h_ref, scale_ref, shift_ref, w2_ref, b2_ref, o_ref):
    h = h_ref[...].astype(jnp.float32)
    r = jnp.maximum(h * scale_ref[...] + shift_ref[...], 0.0)
    out = jnp.dot(r.astype(w2_ref.dtype), w2_ref[...],
                  preferred_element_type=jnp.float32) + b2_ref[...]
    o_ref[...] = out.astype(o_ref.dtype)


def projection_head(x, w1_t, b1, gamma, beta, w2_t, b2, *, tile_n=512,
                    compute_dtype=jnp.bfloat16, force_streaming=False):
    """Linear(Din->Dh) -> BatchNorm1d (batch stats) -> ReLU -> Linear(Dh->Dout).

    x: (N, Din); w1_t: (Din, Dh); w2_t: (Dh, Dout); b1/gamma/beta: (1, Dh); b2: (1, Dout).
    Weights are pre-transposed to (in, out) so both MXU matmuls are plain `x @ W`.
    Matmul operands run in `compute_dtype` (bf16 default) with f32 accumulation;
    BN statistics / parameters stay f32.
    """
    n, din = x.shape
    dh = w1_t.shape[1]
    dout = w2_t.shape[1]
    out_dtype = x.dtype

    cdt = jnp.dtype(compute_dtype)
    csz = cdt.itemsize
    osz = jnp.dtype(out_dtype).itemsize

    # Hidden/output feature dims padded to 128 lanes (cheap: weights only); Din is left
    # as-is (full Din = one block), so x never needs a feature-dim pad copy.
    dh_p = _round_up(dh, 128)
    dout_p = _round_up(dout, 128)

    # Batch tile: multiple of 8 sublanes, capped by the (rounded-up) batch.
    tile_n = max(8, min(_round_up(tile_n, 8), _round_up(n, 8)))
    n_pad = _round_up(n, tile_n)
    n_tiles = n_pad // tile_n

    # Matmul operands in compute dtype; bias / BN parameters in f32.
    xc = x.astype(cdt)
    if n_pad != n:
        # Row padding only for ragged batches: padded rows are exact zeros, so
        # h(pad) == b1 exactly and the shifted BN sums pick up exactly 0 - no per-tile
        # masking and no correction term needed inside the kernels.
        xc = jnp.pad(xc, ((0, n_pad - n), (0, 0)))
    w1c = _pad2(w1_t.astype(cdt), din, dh_p)
    w2c = _pad2(w2_t.astype(cdt), dh_p, dout_p)
    b1f = _pad2(b1.astype(jnp.float32), 1, dh_p)
    gmf = _pad2(gamma.astype(jnp.float32), 1, dh_p)
    btf = _pad2(beta.astype(jnp.float32), 1, dh_p)
    b2f = _pad2(b2.astype(jnp.float32), 1, dout_p)

    budget = _vmem_budget_bytes()
    w_bytes = (din * dh_p + dh_p * dout_p) * csz + (4 * dh_p + dout_p) * 4
    # Fused-path VMEM need: double-buffered x/out tiles + single-buffered weights +
    # resident h scratch + (1, Dh) stats.
    fused_req = (2 * tile_n * din * csz + 2 * tile_n * dout_p * osz
                 + w_bytes + n_pad * dh_p * csz + 4 * dh_p * 4)
    use_fused = (not force_streaming) and (fused_req + fused_req // 4 <= budget)

    def vmem_limit(req):
        return min(budget, max(req + req // 4 + (2 << 20), 16 << 20))

    if use_fused:
        out_p = pl.pallas_call(
            functools.partial(_fused_kernel, tile_n=tile_n, n_valid=n),
            grid=(2, n_tiles),
            in_specs=[
                # x streams in phase 0; pinned to tile 0 in phase 1 (no re-fetch).
                pl.BlockSpec((tile_n, din), lambda p, i: ((1 - p) * i, 0)),
                _pinned_spec((din, dh_p), lambda p, i: (0, 0)),      # W1
                _pinned_spec((1, dh_p), lambda p, i: (0, 0)),        # b1
                _pinned_spec((1, dh_p), lambda p, i: (0, 0)),        # gamma
                _pinned_spec((1, dh_p), lambda p, i: (0, 0)),        # beta
                _pinned_spec((dh_p, dout_p), lambda p, i: (0, 0)),   # W2
                _pinned_spec((1, dout_p), lambda p, i: (0, 0)),      # b2
            ],
            # Pinned to block 0 during phase 0 (never written there), streams in phase 1.
            out_specs=pl.BlockSpec((tile_n, dout_p), lambda p, i: (p * i, 0)),
            out_shape=jax.ShapeDtypeStruct((n_pad, dout_p), out_dtype),
            scratch_shapes=[
                pltpu.VMEM((n_pad, dh_p), cdt),       # resident h (no HBM round trip)
                pltpu.VMEM((1, dh_p), jnp.float32),   # sum(h - b1)
                pltpu.VMEM((1, dh_p), jnp.float32),   # sum((h - b1)^2)
                pltpu.VMEM((1, dh_p), jnp.float32),   # folded scale
                pltpu.VMEM((1, dh_p), jnp.float32),   # folded shift
            ],
            compiler_params=pltpu.CompilerParams(
                dimension_semantics=("arbitrary", "arbitrary"),
                vmem_limit_bytes=vmem_limit(fused_req)),
            cost_estimate=pl.CostEstimate(
                flops=2 * n_pad * din * dh_p + 2 * n_pad * dh_p * dout_p,
                transcendentals=dh_p,
                bytes_accessed=n_pad * din * csz + w_bytes + n_pad * dout_p * osz),
        )(xc, w1c, b1f, gmf, btf, w2c, b2f)
        return out_p[:n, :dout]

    # ---- Streaming fallback: h round-trips HBM in the compute dtype ----
    grid = (n_tiles,)
    p1_req = (2 * tile_n * din * csz + din * dh_p * csz + dh_p * 4
              + 2 * tile_n * dh_p * csz + 2 * dh_p * 4)
    h, s1, s2 = pl.pallas_call(
        _hidden_stats_kernel,
        grid=grid,
        in_specs=[
            pl.BlockSpec((tile_n, din), lambda i: (i, 0)),           # x streams
            _pinned_spec((din, dh_p), lambda i: (0, 0)),             # W1 resident
            _pinned_spec((1, dh_p), lambda i: (0, 0)),               # b1 resident
        ],
        out_specs=[
            pl.BlockSpec((tile_n, dh_p), lambda i: (i, 0)),          # h streams
            pl.BlockSpec((1, dh_p), lambda i: (0, 0)),               # resident accumulators
            pl.BlockSpec((1, dh_p), lambda i: (0, 0)),
        ],
        out_shape=[
            jax.ShapeDtypeStruct((n_pad, dh_p), cdt),
            jax.ShapeDtypeStruct((1, dh_p), jnp.float32),
            jax.ShapeDtypeStruct((1, dh_p), jnp.float32),
        ],
        compiler_params=pltpu.CompilerParams(
            dimension_semantics=("arbitrary",),                      # stats reduce over tiles
            vmem_limit_bytes=vmem_limit(p1_req)),
        cost_estimate=pl.CostEstimate(
            flops=2 * n_pad * din * dh_p,
            transcendentals=0,
            bytes_accessed=n_pad * din * csz + din * dh_p * csz + n_pad * dh_p * csz),
    )(xc, w1c, b1f)

    # Fold the shifted sums into a per-column scale/shift once (tiny (1, Dh) XLA op).
    m = s1 / n
    var = jnp.maximum(s2 / n - m * m, 0.0)                           # biased variance
    mean = b1f + m
    scale = gmf * lax.rsqrt(var + BN_EPS)
    shift = btf - mean * scale

    p2_req = (2 * tile_n * dh_p * csz + 2 * dh_p * 4 + dh_p * dout_p * csz
              + dout_p * 4 + 2 * tile_n * dout_p * osz)
    out_p = pl.pallas_call(
        _bn_relu_out_kernel,
        grid=grid,
        in_specs=[
            pl.BlockSpec((tile_n, dh_p), lambda i: (i, 0)),          # h streams
            _pinned_spec((1, dh_p), lambda i: (0, 0)),               # scale
            _pinned_spec((1, dh_p), lambda i: (0, 0)),               # shift
            _pinned_spec((dh_p, dout_p), lambda i: (0, 0)),          # W2 resident
            _pinned_spec((1, dout_p), lambda i: (0, 0)),             # b2
        ],
        out_specs=pl.BlockSpec((tile_n, dout_p), lambda i: (i, 0)),
        out_shape=jax.ShapeDtypeStruct((n_pad, dout_p), out_dtype),
        compiler_params=pltpu.CompilerParams(
            dimension_semantics=("parallel",),                       # independent tiles
            vmem_limit_bytes=vmem_limit(p2_req)),
        cost_estimate=pl.CostEstimate(
            flops=2 * n_pad * dh_p * dout_p + 4 * n_pad * dh_p,
            transcendentals=0,
            bytes_accessed=n_pad * dh_p * csz + dh_p * dout_p * csz
            + n_pad * dout_p * osz + 2 * dh_p * 4),
    )(h, scale, shift, w2c, b2f)
    return out_p[:n, :dout]


def init_params(key, input_dim, hidden_dim, output_dim, dtype=jnp.float32):
    """Deterministic init mimicking PyTorch Linear defaults (uniform +-1/sqrt(fan_in))."""
    k1, k2, k3, k4 = jax.random.split(key, 4)
    lim1 = 1.0 / (input_dim ** 0.5)
    lim2 = 1.0 / (hidden_dim ** 0.5)
    # Stored already transposed: (in, out).
    w1_t = jax.random.uniform(k1, (input_dim, hidden_dim), dtype, -lim1, lim1)
    b1 = jax.random.uniform(k2, (1, hidden_dim), dtype, -lim1, lim1)
    w2_t = jax.random.uniform(k3, (hidden_dim, output_dim), dtype, -lim2, lim2)
    b2 = jax.random.uniform(k4, (1, output_dim), dtype, -lim2, lim2)
    # BatchNorm1d defaults: weight=1, bias=0.
    gamma = jnp.ones((1, hidden_dim), dtype)
    beta = jnp.zeros((1, hidden_dim), dtype)
    return w1_t, b1, gamma, beta, w2_t, b2


def reference(x, w1_t, b1, gamma, beta, w2_t, b2):
    f32 = jnp.float32
    hi = lax.Precision.HIGHEST
    h = jnp.dot(x.astype(f32), w1_t.astype(f32), precision=hi) + b1.astype(f32)
    mean = jnp.mean(h, axis=0, keepdims=True)
    var = jnp.mean((h - mean) ** 2, axis=0, keepdims=True)
    h = (h - mean) / jnp.sqrt(var + BN_EPS) * gamma.astype(f32) + beta.astype(f32)
    h = jnp.maximum(h, 0.0)
    out = jnp.dot(h, w2_t.astype(f32), precision=hi) + b2.astype(f32)
    return out.astype(x.dtype)


if __name__ == "__main__":
    # Small shapes consistent with the module (defaults 1280 -> 1280 -> 128, scaled
    # down) and chosen to exercise ragged batch tiling + hidden/output feature padding.
    batch, input_dim, hidden_dim, output_dim = 200, 320, 192, 96

    key = jax.random.PRNGKey(0)
    kx, kp = jax.random.split(key)
    x = jax.random.normal(kx, (batch, input_dim), jnp.float32)
    params = init_params(kp, input_dim, hidden_dim, output_dim)
    ref = reference(x, *params)

    # 1) Fused single-kernel path, f32 compute: tight numerical check of the math.
    out_f32 = jax.block_until_ready(projection_head(x, *params, compute_dtype=jnp.float32))
    assert out_f32.shape == (batch, output_dim)
    assert jnp.allclose(out_f32, ref, atol=2e-3, rtol=2e-3), \
        float(jnp.max(jnp.abs(out_f32 - ref)))

    # 2) Fused path, default bf16 compute (bf16 MXU + half the DMA bytes); tile_n=128
    #    here only to exercise the multi-tile / ragged-batch code path at this tiny N.
    out_bf16 = jax.block_until_ready(projection_head(x, *params, tile_n=128))
    assert jnp.allclose(out_bf16, ref, atol=6e-2, rtol=6e-2), \
        float(jnp.max(jnp.abs(out_bf16 - ref)))

    # 3) Streaming two-kernel fallback (used when h does not fit in VMEM), bf16 h.
    out_stream = jax.block_until_ready(
        projection_head(x, *params, tile_n=128, force_streaming=True))
    assert jnp.allclose(out_stream, ref, atol=6e-2, rtol=6e-2), \
        float(jnp.max(jnp.abs(out_stream - ref)))

    print("KERNEL_OK")
</pallas_src>

<mosaic_0001>
module attributes {stable_mosaic.version = 11 : i64} {
  func.func @_fused_kernel(%arg0: i32, %arg1: i32, %arg2: memref<200x320xf32, #tpu.memory_space<vmem>>, %arg3: memref<320x256xf32, #tpu.memory_space<vmem>>, %arg4: memref<1x256xf32, #tpu.memory_space<vmem>>, %arg5: memref<1x256xf32, #tpu.memory_space<vmem>>, %arg6: memref<1x256xf32, #tpu.memory_space<vmem>>, %arg7: memref<256x128xf32, #tpu.memory_space<vmem>>, %arg8: memref<1x128xf32, #tpu.memory_space<vmem>>, %arg9: memref<200x128xf32, #tpu.memory_space<vmem>>, %arg10: memref<200x256xf32, #tpu.memory_space<vmem>>, %arg11: memref<1x256xf32, #tpu.memory_space<vmem>>, %arg12: memref<1x256xf32, #tpu.memory_space<vmem>>, %arg13: memref<1x256xf32, #tpu.memory_space<vmem>>, %arg14: memref<1x256xf32, #tpu.memory_space<vmem>>) attributes {dimension_semantics = [#tpu.dimension_semantics<arbitrary>, #tpu.dimension_semantics<arbitrary>], iteration_bounds = array<i64: 2, 1>, scalar_prefetch = 0 : i64, scratch_operands = 5 : i64, tpu.core_type = #tpu.core_type<tc>, window_params = [{transform_indices = @transform_0, window_bounds = array<i64: 200, 320>}, {pipeline_mode = #tpu.pipeline_mode<synchronous>, transform_indices = @transform_1, window_bounds = array<i64: 320, 256>}, {pipeline_mode = #tpu.pipeline_mode<synchronous>, transform_indices = @transform_2, window_bounds = array<i64: 1, 256>}, {pipeline_mode = #tpu.pipeline_mode<synchronous>, transform_indices = @transform_3, window_bounds = array<i64: 1, 256>}, {pipeline_mode = #tpu.pipeline_mode<synchronous>, transform_indices = @transform_4, window_bounds = array<i64: 1, 256>}, {pipeline_mode = #tpu.pipeline_mode<synchronous>, transform_indices = @transform_5, window_bounds = array<i64: 256, 128>}, {pipeline_mode = #tpu.pipeline_mode<synchronous>, transform_indices = @transform_6, window_bounds = array<i64: 1, 128>}, {transform_indices = @transform_7, window_bounds = array<i64: 200, 128>}]} {
    %c200_i32 = arith.constant 200 : i32
    %0 = arith.muli %arg1, %c200_i32 : i32
    %1 = tpu.assume_multiple %0, 8 : i32
    %c0_i32 = arith.constant 0 : i32
    %2 = arith.cmpi eq, %arg0, %c0_i32 : i32
    %3 = arith.extui %2 : i1 to i32
    %c0_i32_0 = arith.constant 0 : i32
    %4 = arith.cmpi ne, %3, %c0_i32_0 : i32
    scf.if %4 {
      %c0 = arith.constant 0 : index
      %c0_2 = arith.constant 0 : index
      %8 = vector.load %arg4[%c0, %c0_2] : memref<1x256xf32, #tpu.memory_space<vmem>>, vector<1x256xf32>
      %c0_3 = arith.constant 0 : index
      %c0_4 = arith.constant 0 : index
      %9 = vector.load %arg2[%c0_3, %c0_4] : memref<200x320xf32, #tpu.memory_space<vmem>>, vector<200x320xf32>
      %c0_5 = arith.constant 0 : index
      %c0_6 = arith.constant 0 : index
      %10 = vector.load %arg3[%c0_5, %c0_6] : memref<320x256xf32, #tpu.memory_space<vmem>>, vector<320x256xf32>
      %cst = arith.constant dense<0.000000e+00> : vector<200x256xf32>
      %11 = tpu.matmul %9, %10, %cst {dimension_numbers = #tpu.dot_dimension_numbers<[1], [0], [0], [1], [0, 0, 1, 1], [], []>} : vector<200x320xf32>, vector<320x256xf32>, vector<200x256xf32> -> vector<200x256xf32>
      %12 = vector.broadcast %8 : vector<1x256xf32> to vector<200x256xf32>
      %13 = arith.addf %11, %12 : vector<200x256xf32>
      %14 = arith.index_cast %1 : i32 to index
      %c0_7 = arith.constant 0 : index
      %15 = vector.load %arg10[%14, %c0_7] : memref<200x256xf32, #tpu.memory_space<vmem>>, vector<200x256xf32>
      tpu.vector_store %arg10[%14, %c0_7], %13 {strides = array<i32>} : memref<200x256xf32, #tpu.memory_space<vmem>>, vector<200x256xf32>,
      %c0_i32_8 = arith.constant 0 : i32
      %16 = arith.cmpi eq, %arg1, %c0_i32_8 : i32
      %17 = arith.extui %16 : i1 to i32
      %c0_i32_9 = arith.constant 0 : i32
      %18 = arith.cmpi ne, %17, %c0_i32_9 : i32
      scf.if %18 {
        %cst_22 = arith.constant 0.000000e+00 : f32
        %35 = vector.broadcast %cst_22 : f32 to vector<1x256xf32>
        %c0_23 = arith.constant 0 : index
        %c0_24 = arith.constant 0 : index
        %36 = vector.load %arg11[%c0_23, %c0_24] : memref<1x256xf32, #tpu.memory_space<vmem>>, vector<1x256xf32>
        tpu.vector_store %arg11[%c0_23, %c0_24], %35 {strides = array<i32>} : memref<1x256xf32, #tpu.memory_space<vmem>>, vector<1x256xf32>,
        %cst_25 = arith.constant 0.000000e+00 : f32
        %37 = vector.broadcast %cst_25 : f32 to vector<1x256xf32>
        %c0_26 = arith.constant 0 : index
        %c0_27 = arith.constant 0 : index
        %38 = vector.load %arg12[%c0_26, %c0_27] : memref<1x256xf32, #tpu.memory_space<vmem>>, vector<1x256xf32>
        tpu.vector_store %arg12[%c0_26, %c0_27], %37 {strides = array<i32>} : memref<1x256xf32, #tpu.memory_space<vmem>>, vector<1x256xf32>,
      } else {
      }
      %19 = vector.broadcast %8 : vector<1x256xf32> to vector<200x256xf32>
      %20 = arith.subf %13, %19 : vector<200x256xf32>
      %c0_10 = arith.constant 0 : index
      %c0_11 = arith.constant 0 : index
      %21 = vector.load %arg11[%c0_10, %c0_11] : memref<1x256xf32, #tpu.memory_space<vmem>>, vector<1x256xf32>
      %cst_12 = arith.constant dense<0.000000e+00> : vector<256xf32>
      %22 = vector.multi_reduction <add>, %20, %cst_12 [0] : vector<200x256xf32> to vector<256xf32>
      %23 = vector.shape_cast %22 : vector<256xf32> to vector<1x256xf32>
      %24 = arith.addf %21, %23 : vector<1x256xf32>
      %c0_13 = arith.constant 0 : index
      %c0_14 = arith.constant 0 : index
      %25 = vector.load %arg11[%c0_13, %c0_14] : memref<1x256xf32, #tpu.memory_space<vmem>>, vector<1x256xf32>
      tpu.vector_store %arg11[%c0_13, %c0_14], %24 {strides = array<i32>} : memref<1x256xf32, #tpu.memory_space<vmem>>, vector<1x256xf32>,
      %c0_15 = arith.constant 0 : index
      %c0_16 = arith.constant 0 : index
      %26 = vector.load %arg12[%c0_15, %c0_16] : memref<1x256xf32, #tpu.memory_space<vmem>>, vector<1x256xf32>
      %27 = arith.mulf %20, %20 : vector<200x256xf32>
      %cst_17 = arith.constant dense<0.000000e+00> : vector<256xf32>
      %28 = vector.multi_reduction <add>, %27, %cst_17 [0] : vector<200x256xf32> to vector<256xf32>
      %29 = vector.shape_cast %28 : vector<256xf32> to vector<1x256xf32>
      %30 = arith.addf %26, %29 : vector<1x256xf32>
      %c0_18 = arith.constant 0 : index
      %c0_19 = arith.constant 0 : index
      %31 = vector.load %arg12[%c0_18, %c0_19] : memref<1x256xf32, #tpu.memory_space<vmem>>, vector<1x256xf32>
      tpu.vector_store %arg12[%c0_18, %c0_19], %30 {strides = array<i32>} : memref<1x256xf32, #tpu.memory_space<vmem>>, vector<1x256xf32>,
      %c0_i32_20 = arith.constant 0 : i32
      %32 = arith.cmpi eq, %arg1, %c0_i32_20 : i32
      %33 = arith.extui %32 : i1 to i32
      %c0_i32_21 = arith.constant 0 : i32
      %34 = arith.cmpi ne, %33, %c0_i32_21 : i32
      scf.if %34 {
        %c0_22 = arith.constant 0 : index
        %c0_23 = arith.constant 0 : index
        %35 = vector.load %arg11[%c0_22, %c0_23] : memref<1x256xf32, #tpu.memory_space<vmem>>, vector<1x256xf32>
        %cst_24 = arith.constant 5.000000e-03 : f32
        %36 = vector.broadcast %cst_24 : f32 to vector<1x256xf32>
        %37 = arith.mulf %35, %36 : vector<1x256xf32>
        %c0_25 = arith.constant 0 : index
        %c0_26 = arith.constant 0 : index
        %38 = vector.load %arg12[%c0_25, %c0_26] : memref<1x256xf32, #tpu.memory_space<vmem>>, vector<1x256xf32>
        %cst_27 = arith.constant 5.000000e-03 : f32
        %39 = vector.broadcast %cst_27 : f32 to vector<1x256xf32>
        %40 = arith.mulf %38, %39 : vector<1x256xf32>
        %41 = arith.mulf %37, %37 : vector<1x256xf32>
        %42 = arith.subf %40, %41 : vector<1x256xf32>
        %cst_28 = arith.constant 0.000000e+00 : f32
        %43 = vector.broadcast %cst_28 : f32 to vector<1x256xf32>
        %44 = arith.maximumf %42, %43 : vector<1x256xf32>
        %c0_29 = arith.constant 0 : index
        %c0_30 = arith.constant 0 : index
        %45 = vector.load %arg5[%c0_29, %c0_30] : memref<1x256xf32, #tpu.memory_space<vmem>>, vector<1x256xf32>
        %cst_31 = arith.constant 9.99999974E-6 : f32
        %46 = vector.broadcast %cst_31 : f32 to vector<1x256xf32>
        %47 = arith.addf %44, %46 : vector<1x256xf32>
        %48 = math.rsqrt %47 : vector<1x256xf32>
        %49 = arith.mulf %45, %48 : vector<1x256xf32>
        %c0_32 = arith.constant 0 : index
        %c0_33 = arith.constant 0 : index
        %50 = vector.load %arg13[%c0_32, %c0_33] : memref<1x256xf32, #tpu.memory_space<vmem>>, vector<1x256xf32>
        tpu.vector_store %arg13[%c0_32, %c0_33], %49 {strides = array<i32>} : memref<1x256xf32, #tpu.memory_space<vmem>>, vector<1x256xf32>,
        %c0_34 = arith.constant 0 : index
        %c0_35 = arith.constant 0 : index
        %51 = vector.load %arg6[%c0_34, %c0_35] : memref<1x256xf32, #tpu.memory_space<vmem>>, vector<1x256xf32>
        %52 = arith.addf %8, %37 : vector<1x256xf32>
        %53 = arith.mulf %52, %49 : vector<1x256xf32>
        %54 = arith.subf %51, %53 : vector<1x256xf32>
        %c0_36 = arith.constant 0 : index
        %c0_37 = arith.constant 0 : index
        %55 = vector.load %arg14[%c0_36, %c0_37] : memref<1x256xf32, #tpu.memory_space<vmem>>, vector<1x256xf32>
        tpu.vector_store %arg14[%c0_36, %c0_37], %54 {strides = array<i32>} : memref<1x256xf32, #tpu.memory_space<vmem>>, vector<1x256xf32>,
      } else {
      }
    } else {
    }
    %c1_i32 = arith.constant 1 : i32
    %5 = arith.cmpi eq, %arg0, %c1_i32 : i32
    %6 = arith.extui %5 : i1 to i32
    %c0_i32_1 = arith.constant 0 : i32
    %7 = arith.cmpi ne, %6, %c0_i32_1 : i32
    scf.if %7 {
      %8 = arith.index_cast %1 : i32 to index
      %c0 = arith.constant 0 : index
      %9 = vector.load %arg10[%8, %c0] : memref<200x256xf32, #tpu.memory_space<vmem>>, vector<200x256xf32>
      %c0_2 = arith.constant 0 : index
      %c0_3 = arith.constant 0 : index
      %10 = vector.load %arg13[%c0_2, %c0_3] : memref<1x256xf32, #tpu.memory_space<vmem>>, vector<1x256xf32>
      %11 = vector.broadcast %10 : vector<1x256xf32> to vector<200x256xf32>
      %12 = arith.mulf %9, %11 : vector<200x256xf32>
      %c0_4 = arith.constant 0 : index
      %c0_5 = arith.constant 0 : index
      %13 = vector.load %arg14[%c0_4, %c0_5] : memref<1x256xf32, #tpu.memory_space<vmem>>, vector<1x256xf32>
      %14 = vector.broadcast %13 : vector<1x256xf32> to vector<200x256xf32>
      %15 = arith.addf %12, %14 : vector<200x256xf32>
      %cst = arith.constant 0.000000e+00 : f32
      %16 = vector.broadcast %cst : f32 to vector<200x256xf32>
      %17 = arith.maximumf %15, %16 : vector<200x256xf32>
      %c0_6 = arith.constant 0 : index
      %c0_7 = arith.constant 0 : index
      %18 = vector.load %arg7[%c0_6, %c0_7] : memref<256x128xf32, #tpu.memory_space<vmem>>, vector<256x128xf32>
      %cst_8 = arith.constant dense<0.000000e+00> : vector<200x128xf32>
      %19 = tpu.matmul %17, %18, %cst_8 {dimension_numbers = #tpu.dot_dimension_numbers<[1], [0], [0], [1], [0, 0, 1, 1], [], []>} : vector<200x256xf32>, vector<256x128xf32>, vector<200x128xf32> -> vector<200x128xf32>
      %c0_9 = arith.constant 0 : index
      %c0_10 = arith.constant 0 : index
      %20 = vector.load %arg8[%c0_9, %c0_10] : memref<1x128xf32, #tpu.memory_space<vmem>>, vector<1x128xf32>
      %21 = vector.broadcast %20 : vector<1x128xf32> to vector<200x128xf32>
      %22 = arith.addf %19, %21 : vector<200x128xf32>
      %c0_11 = arith.constant 0 : index
      %c0_12 = arith.constant 0 : index
      %23 = vector.load %arg9[%c0_11, %c0_12] : memref<200x128xf32, #tpu.memory_space<vmem>>, vector<200x128xf32>
      tpu.vector_store %arg9[%c0_11, %c0_12], %22 {strides = array<i32>} : memref<200x128xf32, #tpu.memory_space<vmem>>, vector<200x128xf32>,
    } else {
    }
    return
  }
  func.func @transform_0(%arg0: i32, %arg1: i32) -> (i32, i32) {
    %c1_i32 = arith.constant 1 : i32
    %0 = arith.subi %c1_i32, %arg0 : i32
    %1 = arith.muli %0, %arg1 : i32
    %c0_i32 = arith.constant 0 : i32
    %c0_i32_0 = arith.constant 0 : i32
    return %1, %c0_i32 : i32, i32
  }
  func.func @transform_1(%arg0: i32, %arg1: i32) -> (i32, i32) {
    %c0_i32 = arith.constant 0 : i32
    %c0_i32_0 = arith.constant 0 : i32
    %c0_i32_1 = arith.constant 0 : i32
    return %c0_i32, %c0_i32_0 : i32, i32
  }
  func.func @transform_2(%arg0: i32, %arg1: i32) -> (i32, i32) {
    %c0_i32 = arith.constant 0 : i32
    %c0_i32_0 = arith.constant 0 : i32
    %c0_i32_1 = arith.constant 0 : i32
    return %c0_i32, %c0_i32_0 : i32, i32
  }
  func.func @transform_3(%arg0: i32, %arg1: i32) -> (i32, i32) {
    %c0_i32 = arith.constant 0 : i32
    %c0_i32_0 = arith.constant 0 : i32
    %c0_i32_1 = arith.constant 0 : i32
    return %c0_i32, %c0_i32_0 : i32, i32
  }
  func.func @transform_4(%arg0: i32, %arg1: i32) -> (i32, i32) {
    %c0_i32 = arith.constant 0 : i32
    %c0_i32_0 = arith.constant 0 : i32
    %c0_i32_1 = arith.constant 0 : i32
    return %c0_i32, %c0_i32_0 : i32, i32
  }
  func.func @transform_5(%arg0: i32, %arg1: i32) -> (i32, i32) {
    %c0_i32 = arith.constant 0 : i32
    %c0_i32_0 = arith.constant 0 : i32
    %c0_i32_1 = arith.constant 0 : i32
    return %c0_i32, %c0_i32_0 : i32, i32
  }
  func.func @transform_6(%arg0: i32, %arg1: i32) -> (i32, i32) {
    %c0_i32 = arith.constant 0 : i32
    %c0_i32_0 = arith.constant 0 : i32
    %c0_i32_1 = arith.constant 0 : i32
    return %c0_i32, %c0_i32_0 : i32, i32
  }
  func.func @transform_7(%arg0: i32, %arg1: i32) -> (i32, i32) {
    %0 = arith.muli %arg0, %arg1 : i32
    %c0_i32 = arith.constant 0 : i32
    %c0_i32_0 = arith.constant 0 : i32
    return %0, %c0_i32 : i32, i32
  }
}

</mosaic_0001>

<llo_original>
// kernel: tpu_custom_call.1
$region0: #{tpu_custom_call.1}
  #allocation0 [shape = 'u32[]', space=smem, size = 0x4, offset = 0x4, fixed_abs, tag = 'smem constant byte address 0x4 - core index']
  #allocation1 [shape = 'u32[144,128]{1,0:T(1,128)}', space=vmem, size = 0x12000, scoped, tag = 'internal scratch']
  #allocation2 [shape = 'f32[200,256]{1,0:T(8,128)}', space=vmem, size = 0x32000, scoped, tag = 'scratch operand']
  #allocation3 [shape = 'f32[1,256]{1,0:T(1,128)}', space=vmem, size = 0x400, scoped, tag = 'scratch operand']
  #allocation4 [shape = 'f32[1,256]{1,0:T(1,128)}', space=vmem, size = 0x400, scoped, tag = 'scratch operand']
  #allocation5 [shape = 'f32[1,256]{1,0:T(1,128)}', space=vmem, size = 0x400, scoped, tag = 'scratch operand']
  #allocation6 [shape = 'f32[1,256]{1,0:T(1,128)}', space=vmem, size = 0x400, scoped, tag = 'scratch operand']
  %s0 = inlined_call_operand.hbm [shape: f32[200,320], index: 0, kind: input, shape index: {}]
  %s1 = inlined_call_operand.hbm [shape: f32[320,256], index: 1, kind: input, shape index: {}]
  %s2 = inlined_call_operand.vmem [shape: f32[1,256], index: 2, kind: input, shape index: {}]
  %s3 = inlined_call_operand.vmem [shape: f32[1,256], index: 3, kind: input, shape index: {}]
  %s4 = inlined_call_operand.vmem [shape: f32[1,256], index: 4, kind: input, shape index: {}]
  %s5 = inlined_call_operand.hbm [shape: f32[256,128], index: 5, kind: input, shape index: {}]
  %s6 = inlined_call_operand.vmem [shape: f32[1,128], index: 6, kind: input, shape index: {}]
  %s7 = inlined_call_operand.hbm [shape: f32[200,128], index: 7, kind: output, shape index: {}]
  %s8 = sld [smem:[#allocation0]]
  $region89: #{tpu_custom_call.1} parent=0
    _
  %s10 = ssub.s32 1, %s8
  %s11 = scalar_select 0, %s10, %s8
  $region1: #{tpu_custom_call.1} parent=0
    #allocation7 [shape = 'u8[614400]{0}', space=vmem, size = 0x96000, scoped, tag = 'input window, operand 0']
    #allocation8 [shape = 's32[2]{0}', space=sflag, size = 0x8, scoped, tag = 'scoped memory for tpu_custom_call.1']
    #allocation9 [shape = 's32[2]{0}', space=sflag, size = 0x8, scoped, tag = 'scoped memory for tpu_custom_call.1']
    #allocation10 [shape = 'u8[327680]{0}', space=vmem, size = 0x50000, scoped, tag = 'input window, operand 1, single buffered']
    #allocation11 [shape = 's32[1]{0}', space=sflag, size = 0x4, scoped, tag = 'scoped memory for tpu_custom_call.1']
    #allocation12 [shape = 'u8[131072]{0}', space=vmem, size = 0x20000, scoped, tag = 'input window, operand 5, single buffered']
    #allocation13 [shape = 'u8[204800]{0}', space=vmem, size = 0x32000, scoped, tag = 'output window, operand 0']
    %12 = vsyncpa [#allocation8], 0
    %s13 = scalar_lea.sflag [#allocation8], 1
    %14 = vsyncpa %s13, 0
    %15 = vsyncpa [#allocation11], 0
    %16 = vsyncpa [#allocation9], 0
    %s17 = scalar_lea.sflag [#allocation9], 1
    %18 = vsyncpa %s17, 0
    loop: start=0, step=1, limit=4
    $region2: #{tpu_custom_call.1} parent=1 // loop_pre_header
      _
    $region3: #{tpu_custom_call.1} parent=1 // loop_header
      %s20 = sphi 0, %s24
      %p21 = scmp.ge.s32.totalorder %s20, 4
      %s27 = sphi 0, %s39
      %s28 = sphi 0, %s35
      %s29 = sphi 0, %s27
      %s30 = sphi 0, %s28
      %s31 = sphi 0, %s29
      %s32 = sphi 0, %s30
      %s46 = sphi 0, %s48
      %s49 = sphi 0, %s46
      %s50 = sphi 0, %s49
      %s66 = sphi 0, %s50
      %s70 = sphi 0, %s70
      %s72 = sphi 0, %s70
      %s73 = sphi 0, %s72
      %s87 = sphi 0, %s73
      %s91 = sphi 0, %s91
      %s93 = sphi 0, %s91
      %s94 = sphi 0, %s93
      %s108 = sphi 0, %s94
      %s112 = sphi 0, %s112
      %s114 = sphi 0, %s112
      %s115 = sphi 0, %s114
      %s129 = sphi 0, %s115
      %s133 = sphi 0, %s133
      %s135 = sphi 0, %s133
      %s136 = sphi 0, %s135
      %s150 = sphi 0, %s136
      %s154 = sphi 0, %s154
      %s156 = sphi 0, %s154
      %s157 = sphi 0, %s156
      %s171 = sphi 0, %s157
      %s175 = sphi 0, %s175
      %s177 = sphi 0, %s175
      %s178 = sphi 0, %s177
      %s192 = sphi 0, %s178
      %s200 = sphi 0, %s202
      %s203 = sphi 0, %s200
      %s204 = sphi 0, %s203
      %s220 = sphi 0, %s204
    $region4: #{tpu_custom_call.1} parent=1 // loop_header_branch
      %23 = sbr.rel (%p21) target = $region8
    $region5: #{tpu_custom_call.1} parent=1 // loop_body
      %s25 = ssub.s32 %s20, 1
      %s26 = ssub.s32 %s20, 2
      %s33 = sadd.s32 1, %s28
      %p34 = scmp.ge.s32.totalorder %s33, 1
      %s35 = scalar_select %p34, 0, %s33
      %s36 = sadd.s32 1, %s27
      %s37 = scalar_select %p34, %s36, %s27
      %p38 = scmp.ge.s32.totalorder %s37, 2
      %s39 = scalar_select %p38, 0, %s37
      %s40 = ssub.s32 1, %s27
      %s41 = smul.u32 %s40, %s28
      %s42 = ssub.s32 1, %s39
      %s43 = smul.u32 %s42, %s35
      %s44 = ssub.s32 %s41, %s43
      %p45 = scmp.eq.s32.totalorder %s44, 0
      %s47 = sadd.s32 %s46, 1
      %s48 = scalar_select %p45, %s46, %s47
      %p51 = pneg %p45
      %p52 = scmp.eq.s32.totalorder %s20, 1
      %p53 = por %p51, %p52
      %p54 = scmp.ne.s32.totalorder %s46, %s49
      %p55 = scmp.eq.s32.totalorder %s20, 0
      %p56 = por %p54, %p55
      %p57 = scmp.ne.s32.totalorder %s46, %s49
      %p58 = scmp.eq.s32.totalorder %s25, 1
      %p59 = por %p57, %p58
      %p60 = scmp.ne.s32.totalorder %s49, %s50
      %p61 = scmp.eq.s32.totalorder %s25, 0
      %p62 = por %p60, %p61
      %p63 = scmp.ne.s32.totalorder %s49, %s50
      %p64 = scmp.eq.s32.totalorder %s26, 1
      %p65 = por %p63, %p64
      %p67 = scmp.ne.s32.totalorder %s50, %s66
      %p68 = scmp.eq.s32.totalorder %s26, 0
      %p69 = por %p67, %p68
      %s71 = sadd.s32 %s70, 1
      %p74 = scmp.eq.s32.totalorder %s20, 1
      %p75 = scmp.ne.s32.totalorder %s70, %s72
      %p76 = scmp.eq.s32.totalorder %s20, 0
      %p77 = por %p75, %p76
      %p78 = scmp.ne.s32.totalorder %s70, %s72
      %p79 = scmp.eq.s32.totalorder %s25, 1
      %p80 = por %p78, %p79
      %p81 = scmp.ne.s32.totalorder %s72, %s73
      %p82 = scmp.eq.s32.totalorder %s25, 0
      %p83 = por %p81, %p82
      %p84 = scmp.ne.s32.totalorder %s72, %s73
      %p85 = scmp.eq.s32.totalorder %s26, 1
      %p86 = por %p84, %p85
      %p88 = scmp.ne.s32.totalorder %s73, %s87
      %p89 = scmp.eq.s32.totalorder %s26, 0
      %p90 = por %p88, %p89
      %s92 = sadd.s32 %s91, 1
      %p95 = scmp.eq.s32.totalorder %s20, 1
      %p96 = scmp.ne.s32.totalorder %s91, %s93
      %p97 = scmp.eq.s32.totalorder %s20, 0
      %p98 = por %p96, %p97
      %p99 = scmp.ne.s32.totalorder %s91, %s93
      %p100 = scmp.eq.s32.totalorder %s25, 1
      %p101 = por %p99, %p100
      %p102 = scmp.ne.s32.totalorder %s93, %s94
      %p103 = scmp.eq.s32.totalorder %s25, 0
      %p104 = por %p102, %p103
      %p105 = scmp.ne.s32.totalorder %s93, %s94
      %p106 = scmp.eq.s32.totalorder %s26, 1
      %p107 = por %p105, %p106
      %p109 = scmp.ne.s32.totalorder %s94, %s108
      %p110 = scmp.eq.s32.totalorder %s26, 0
      %p111 = por %p109, %p110
      %s113 = sadd.s32 %s112, 1
      %p116 = scmp.eq.s32.totalorder %s20, 1
      %p117 = scmp.ne.s32.totalorder %s112, %s114
      %p118 = scmp.eq.s32.totalorder %s20, 0
      %p119 = por %p117, %p118
      %p120 = scmp.ne.s32.totalorder %s112, %s114
      %p121 = scmp.eq.s32.totalorder %s25, 1
      %p122 = por %p120, %p121
      %p123 = scmp.ne.s32.totalorder %s114, %s115
      %p124 = scmp.eq.s32.totalorder %s25, 0
      %p125 = por %p123, %p124
      %p126 = scmp.ne.s32.totalorder %s114, %s115
      %p127 = scmp.eq.s32.totalorder %s26, 1
      %p128 = por %p126, %p127
      %p130 = scmp.ne.s32.totalorder %s115, %s129
      %p131 = scmp.eq.s32.totalorder %s26, 0
      %p132 = por %p130, %p131
      %s134 = sadd.s32 %s133, 1
      %p137 = scmp.eq.s32.totalorder %s20, 1
      %p138 = scmp.ne.s32.totalorder %s133, %s135
      %p139 = scmp.eq.s32.totalorder %s20, 0
      %p140 = por %p138, %p139
      %p141 = scmp.ne.s32.totalorder %s133, %s135
      %p142 = scmp.eq.s32.totalorder %s25, 1
      %p143 = por %p141, %p142
      %p144 = scmp.ne.s32.totalorder %s135, %s136
      %p145 = scmp.eq.s32.totalorder %s25, 0
      %p146 = por %p144, %p145
      %p147 = scmp.ne.s32.totalorder %s135, %s136
      %p148 = scmp.eq.s32.totalorder %s26, 1
      %p149 = por %p147, %p148
      %p151 = scmp.ne.s32.totalorder %s136, %s150
      %p152 = scmp.eq.s32.totalorder %s26, 0
      %p153 = por %p151, %p152
      %s155 = sadd.s32 %s154, 1
      %p158 = scmp.eq.s32.totalorder %s20, 1
      %p159 = scmp.ne.s32.totalorder %s154, %s156
      %p160 = scmp.eq.s32.totalorder %s20, 0
      %p161 = por %p159, %p160
      %p162 = scmp.ne.s32.totalorder %s154, %s156
      %p163 = scmp.eq.s32.totalorder %s25, 1
      %p164 = por %p162, %p163
      %p165 = scmp.ne.s32.totalorder %s156, %s157
      %p166 = scmp.eq.s32.totalorder %s25, 0
      %p167 = por %p165, %p166
      %p168 = scmp.ne.s32.totalorder %s156, %s157
      %p169 = scmp.eq.s32.totalorder %s26, 1
      %p170 = por %p168, %p169
      %p172 = scmp.ne.s32.totalorder %s157, %s171
      %p173 = scmp.eq.s32.totalorder %s26, 0
      %p174 = por %p172, %p173
      %s176 = sadd.s32 %s175, 1
      %p179 = scmp.eq.s32.totalorder %s20, 1
      %p180 = scmp.ne.s32.totalorder %s175, %s177
      %p181 = scmp.eq.s32.totalorder %s20, 0
      %p182 = por %p180, %p181
      %p183 = scmp.ne.s32.totalorder %s175, %s177
      %p184 = scmp.eq.s32.totalorder %s25, 1
      %p185 = por %p183, %p184
      %p186 = scmp.ne.s32.totalorder %s177, %s178
      %p187 = scmp.eq.s32.totalorder %s25, 0
      %p188 = por %p186, %p187
      %p189 = scmp.ne.s32.totalorder %s177, %s178
      %p190 = scmp.eq.s32.totalorder %s26, 1
      %p191 = por %p189, %p190
      %p193 = scmp.ne.s32.totalorder %s178, %s192
      %p194 = scmp.eq.s32.totalorder %s26, 0
      %p195 = por %p193, %p194
      %s196 = smul.u32 %s27, %s28
      %s197 = smul.u32 %s39, %s35
      %s198 = ssub.s32 %s196, %s197
      %p199 = scmp.eq.s32.totalorder %s198, 0
      %s201 = sadd.s32 %s200, 1
      %s202 = scalar_select %p199, %s200, %s201
      %p205 = pneg %p199
      %p206 = scmp.eq.s32.totalorder %s20, 1
      %p207 = por %p205, %p206
      %p208 = scmp.ne.s32.totalorder %s200, %s203
      %p209 = scmp.eq.s32.totalorder %s20, 0
      %p210 = por %p208, %p209
      %p211 = scmp.ne.s32.totalorder %s200, %s203
      %p212 = scmp.eq.s32.totalorder %s25, 1
      %p213 = por %p211, %p212
      %p214 = scmp.ne.s32.totalorder %s203, %s204
      %p215 = scmp.eq.s32.totalorder %s25, 0
      %p216 = por %p214, %p215
      %p217 = scmp.ne.s32.totalorder %s203, %s204
      %p218 = scmp.eq.s32.totalorder %s26, 1
      %p219 = por %p217, %p218
      %p221 = scmp.ne.s32.totalorder %s204, %s220
      %p222 = scmp.eq.s32.totalorder %s26, 0
      %p223 = por %p221, %p222
      %p224 = scmp.le.s32.totalorder 1, %s20
      %p225 = scmp.lt.s32.totalorder %s20, 3
      %p226 = pnand %p224, %p225
      %p227 = pneg %p226
      // Predicated region
      $region9: #{tpu_custom_call.1} parent=5 // pred_check
        _
      $region10: #{tpu_custom_call.1} parent=5 // pred_check_branch
        %229 = sbr.rel (%p226) target = $region12
      $region11: #{tpu_custom_call.1} parent=5 // pred_region
        %s230 = ssub.s32 %s20, 1
        // Predicated region
        $region13: #{tpu_custom_call.1} parent=11 // pred_check
          %p231 = pneg %p83
        $region14: #{tpu_custom_call.1} parent=11 // pred_check_branch
          %233 = sbr.rel (%p231) target = $region16
        $region15: #{tpu_custom_call.1} parent=11 // pred_region
          %s235 = ssub.s32 10240, 10240
          %236 = vsyncadd [#allocation11], %s235
          %s237 = sshll.u32 [#allocation10], 4
          %s238 = int_to_ptr.vmem [resolvable:$true] %s237
          %243 = dma.hbm_to_vmem [thread:$0]  %s1, 10240, %s238, [#allocation11], 256, 256, 16
        $region16: #{tpu_custom_call.1} parent=11 // pred_fallthru
          _
        // Predicated region
        $region17: #{tpu_custom_call.1} parent=11 // pred_check
          %p244 = pneg %p104
        $region18: #{tpu_custom_call.1} parent=11 // pred_check_branch
          %246 = sbr.rel (%p244) target = $region20
        $region19: #{tpu_custom_call.1} parent=11 // pred_region
          _
        $region20: #{tpu_custom_call.1} parent=11 // pred_fallthru
          _
        // Predicated region
        $region21: #{tpu_custom_call.1} parent=11 // pred_check
          %p247 = pneg %p125
        $region22: #{tpu_custom_call.1} parent=11 // pred_check_branch
          %249 = sbr.rel (%p247) target = $region24
        $region23: #{tpu_custom_call.1} parent=11 // pred_region
          _
        $region24: #{tpu_custom_call.1} parent=11 // pred_fallthru
          _
        // Predicated region
        $region25: #{tpu_custom_call.1} parent=11 // pred_check
          %p250 = pneg %p146
        $region26: #{tpu_custom_call.1} parent=11 // pred_check_branch
          %252 = sbr.rel (%p250) target = $region28
        $region27: #{tpu_custom_call.1} parent=11 // pred_region
          _
        $region28: #{tpu_custom_call.1} parent=11 // pred_fallthru
          _
        // Predicated region
        $region29: #{tpu_custom_call.1} parent=11 // pred_check
          %p253 = pneg %p167
        $region30: #{tpu_custom_call.1} parent=11 // pred_check_branch
          %255 = sbr.rel (%p253) target = $region32
        $region31: #{tpu_custom_call.1} parent=11 // pred_region
          %s257 = ssub.s32 4096, 4096
          %258 = vsyncadd [#allocation11], %s257
          %s259 = sshll.u32 [#allocation12], 4
          %s260 = int_to_ptr.vmem [resolvable:$true] %s259
          %265 = dma.hbm_to_vmem [thread:$0]  %s5, 4096, %s260, [#allocation11], 128, 128, 8
        $region32: #{tpu_custom_call.1} parent=11 // pred_fallthru
          _
        // Predicated region
        $region33: #{tpu_custom_call.1} parent=11 // pred_check
          %p266 = pneg %p188
        $region34: #{tpu_custom_call.1} parent=11 // pred_check_branch
          %268 = sbr.rel (%p266) target = $region36
        $region35: #{tpu_custom_call.1} parent=11 // pred_region
          _
        $region36: #{tpu_custom_call.1} parent=11 // pred_fallthru
          _
      $region12: #{tpu_custom_call.1} parent=5 // pred_fallthru
        _
      %p269 = scmp.lt.s32.totalorder %s20, 2
      // Predicated region
      $region37: #{tpu_custom_call.1} parent=5 // pred_check
        %p270 = pneg %p269
      $region38: #{tpu_custom_call.1} parent=5 // pred_check_branch
        %272 = sbr.rel (%p270) target = $region40
      $region39: #{tpu_custom_call.1} parent=5 // pred_region
        // Predicated region
        $region41: #{tpu_custom_call.1} parent=39 // pred_check
          %p273 = pneg %p56
        $region42: #{tpu_custom_call.1} parent=39 // pred_check_branch
          %275 = sbr.rel (%p273) target = $region44
        $region43: #{tpu_custom_call.1} parent=39 // pred_region
          %s276 = sand.u32 %s46, 1
          %s277 = scalar_lea.sflag [#allocation8], %s276
          %s278 = sand.u32 %s46, 1
          %s279 = smul.addr %s278, 600
          %s280 = scalar_lea.vmem [#allocation7], %s279
          %s281 = ssub.s32 1, %s27
          %s282 = smul.u32 %s281, %s28
          %s283 = smul.u32 25, %s282
          %s285 = ssub.s32 9600, 9600
          %286 = vsyncadd %s277, %s285
          %s287 = smul.addr %s283, 3
          %s288 = smul.addr %s287, 128
          %s289 = scalar_lea.hbm %s0, %s288
          %s290 = sshll.u32 %s280, 4
          %s291 = int_to_ptr.vmem [resolvable:$true] %s290
          %296 = dma.hbm_to_vmem [thread:$0]  %s289, 9600, %s291, %s277, 384, 384, 24
        $region44: #{tpu_custom_call.1} parent=39 // pred_fallthru
          _
      $region40: #{tpu_custom_call.1} parent=5 // pred_fallthru
        _
      %p297 = scmp.le.s32.totalorder 1, %s20
      %p298 = scmp.lt.s32.totalorder %s20, 3
      %p299 = pnand %p297, %p298
      %p300 = pneg %p299
      // Predicated region
      $region45: #{tpu_custom_call.1} parent=5 // pred_check
        _
      $region46: #{tpu_custom_call.1} parent=5 // pred_check_branch
        %302 = sbr.rel (%p299) target = $region48
      $region47: #{tpu_custom_call.1} parent=5 // pred_region
        %s303 = ssub.s32 %s20, 1
        %s304 = sand.u32 %s49, 1
        %s305 = scalar_lea.sflag [#allocation8], %s304
        %s306 = sand.u32 %s49, 1
        %s307 = smul.addr %s306, 600
        %s308 = scalar_lea.vmem [#allocation7], %s307
        // Predicated region
        $region49: #{tpu_custom_call.1} parent=47 // pred_check
          %p309 = pneg %p62
        $region50: #{tpu_custom_call.1} parent=47 // pred_check_branch
          %311 = sbr.rel (%p309) target = $region52
        $region51: #{tpu_custom_call.1} parent=47 // pred_region
          %312 = dma.done %s305, 9600
        $region52: #{tpu_custom_call.1} parent=47 // pred_fallthru
          _
        // Predicated region
        $region53: #{tpu_custom_call.1} parent=47 // pred_check
          %p313 = pneg %p83
        $region54: #{tpu_custom_call.1} parent=47 // pred_check_branch
          %315 = sbr.rel (%p313) target = $region56
        $region55: #{tpu_custom_call.1} parent=47 // pred_region
          %316 = dma.done [#allocation11], 10240
        $region56: #{tpu_custom_call.1} parent=47 // pred_fallthru
          _
        // Predicated region
        $region57: #{tpu_custom_call.1} parent=47 // pred_check
          %p317 = pneg %p167
        $region58: #{tpu_custom_call.1} parent=47 // pred_check_branch
          %319 = sbr.rel (%p317) target = $region60
        $region59: #{tpu_custom_call.1} parent=47 // pred_region
          %320 = dma.done [#allocation11], 4096
        $region60: #{tpu_custom_call.1} parent=47 // pred_fallthru
          _
        %s321 = sand.u32 %s49, 1
        %s322 = scalar_lea.sflag [#allocation8], %s321
        %s323 = sand.u32 %s49, 1
        %s324 = smul.addr %s323, 600
        %s325 = scalar_lea.vmem [#allocation7], %s324
        %p326 = pneg %p62
        %p327 = pneg %p59
        %p328 = pneg %p83
        %p329 = pneg %p80
        %p330 = pneg %p104
        %p331 = pneg %p101
        %p332 = pneg %p125
        %p333 = pneg %p122
        %p334 = pneg %p146
        %p335 = pneg %p143
        %p336 = pneg %p167
        %p337 = pneg %p164
        %p338 = pneg %p188
        %p339 = pneg %p185
        %p340 = pneg %p216
        %p341 = pneg %p213
        %s342 = sand.u32 %s203, 1
        %s343 = scalar_lea.sflag [#allocation9], %s342
        %s344 = sand.u32 %s203, 1
        %s345 = smul.addr %s344, 200
        %s346 = scalar_lea.vmem [#allocation13], %s345
        %s347 = ssub.s32 1, %s29
        %s348 = smul.u32 %s347, %s30
        %s349 = smul.u32 25, %s348
        %s350 = smul.u32 %s29, %s30
        %s351 = smul.u32 25, %s350
        %s352 = smul.u32 %s30, 200
        %p353 = scmp.eq.s32.totalorder %s29, 0
        // Predicated region
        $region61: #{tpu_custom_call.1} parent=47 // pred_check
          %p354 = pneg %p353
        $region62: #{tpu_custom_call.1} parent=47 // pred_check_branch
          %356 = sbr.rel (%p354) target = $region64
        $region63: #{tpu_custom_call.1} parent=47 // pred_region
          %v357 = vld [vmem:[%s2] sm:$0x3]
          %v358 = vld [vmem:[%s308] sm:$0xff]
          %v359 = vld [vmem:[%s308 + $0x8] sm:$0xff]
          %v360 = vld [vmem:[%s308 + $0x10] sm:$0xff]
          %v361 = vld [vmem:[%s308 + $0x18] sm:$0xff]
          %v362 = vld [vmem:[%s308 + $0x20] sm:$0xff]
          %v363 = vld [vmem:[%s308 + $0x28] sm:$0xff]
          %v364 = vld [vmem:[%s308 + $0x30] sm:$0xff]
          %v365 = vld [vmem:[%s308 + $0x38] sm:$0xff]
          %v366 = vld [vmem:[%s308 + $0x40] sm:$0xff]
          %v367 = vld [vmem:[%s308 + $0x48] sm:$0xff]
          %v368 = vld [vmem:[%s308 + $0x50] sm:$0xff]
          %v369 = vld [vmem:[%s308 + $0x58] sm:$0xff]
          %v370 = vld [vmem:[%s308 + $0x60] sm:$0xff]
          %v371 = vld [vmem:[%s308 + $0x68] sm:$0xff]
          %v372 = vld [vmem:[%s308 + $0x70] sm:$0xff]
          %v373 = vld [vmem:[%s308 + $0x78] sm:$0xff]
          %v374 = vld [vmem:[%s308 + $0x80] sm:$0xff]
          %v375 = vld [vmem:[%s308 + $0x88] sm:$0xff]
          %v376 = vld [vmem:[%s308 + $0x90] sm:$0xff]
          %v377 = vld [vmem:[%s308 + $0x98] sm:$0xff]
          %v378 = vld [vmem:[%s308 + $0xa0] sm:$0xff]
          %v379 = vld [vmem:[%s308 + $0xa8] sm:$0xff]
          %v380 = vld [vmem:[%s308 + $0xb0] sm:$0xff]
          %v381 = vld [vmem:[%s308 + $0xb8] sm:$0xff]
          %v382 = vld [vmem:[%s308 + $0xc0] sm:$0xff]
          %v383 = vld [vmem:[%s308 + $0xc8] sm:$0xff]
          %v384 = vld [vmem:[%s308 + $0xd0] sm:$0xff]
          %v385 = vld [vmem:[%s308 + $0xd8] sm:$0xff]
          %v386 = vld [vmem:[%s308 + $0xe0] sm:$0xff]
          %v387 = vld [vmem:[%s308 + $0xe8] sm:$0xff]
          %v388 = vld [vmem:[%s308 + $0xf0] sm:$0xff]
          %v389 = vld [vmem:[%s308 + $0xf8] sm:$0xff]
          %v390 = vld [vmem:[%s308 + $0x100] sm:$0xff]
          %v391 = vld [vmem:[%s308 + $0x108] sm:$0xff]
          %v392 = vld [vmem:[%s308 + $0x110] sm:$0xff]
          %v393 = vld [vmem:[%s308 + $0x118] sm:$0xff]
          %v394 = vld [vmem:[%s308 + $0x120] sm:$0xff]
          %v395 = vld [vmem:[%s308 + $0x128] sm:$0xff]
          %v396 = vld [vmem:[%s308 + $0x130] sm:$0xff]
          %v397 = vld [vmem:[%s308 + $0x138] sm:$0xff]
          %v398 = vld [vmem:[%s308 + $0x140] sm:$0xff]
          %v399 = vld [vmem:[%s308 + $0x148] sm:$0xff]
          %v400 = vld [vmem:[%s308 + $0x150] sm:$0xff]
          %v401 = vld [vmem:[%s308 + $0x158] sm:$0xff]
          %v402 = vld [vmem:[%s308 + $0x160] sm:$0xff]
          %v403 = vld [vmem:[%s308 + $0x168] sm:$0xff]
          %v404 = vld [vmem:[%s308 + $0x170] sm:$0xff]
          %v405 = vld [vmem:[%s308 + $0x178] sm:$0xff]
          %v406 = vld [vmem:[%s308 + $0x180] sm:$0xff]
          %v407 = vld [vmem:[%s308 + $0x188] sm:$0xff]
          %v408 = vld [vmem:[%s308 + $0x190] sm:$0xff]
          %v409 = vld [vmem:[%s308 + $0x198] sm:$0xff]
          %v410 = vld [vmem:[%s308 + $0x1a0] sm:$0xff]
          %v411 = vld [vmem:[%s308 + $0x1a8] sm:$0xff]
          %v412 = vld [vmem:[%s308 + $0x1b0] sm:$0xff]
          %v413 = vld [vmem:[%s308 + $0x1b8] sm:$0xff]
          %v414 = vld [vmem:[%s308 + $0x1c0] sm:$0xff]
          %v415 = vld [vmem:[%s308 + $0x1c8] sm:$0xff]
          %v416 = vld [vmem:[%s308 + $0x1d0] sm:$0xff]
          %v417 = vld [vmem:[%s308 + $0x1d8] sm:$0xff]
          %v418 = vld [vmem:[%s308 + $0x1e0] sm:$0xff]
          %v419 = vld [vmem:[%s308 + $0x1e8] sm:$0xff]
          %v420 = vld [vmem:[%s308 + $0x1f0] sm:$0xff]
          %v421 = vld [vmem:[%s308 + $0x1f8] sm:$0xff]
          %v422 = vld [vmem:[%s308 + $0x200] sm:$0xff]
          %v423 = vld [vmem:[%s308 + $0x208] sm:$0xff]
          %v424 = vld [vmem:[%s308 + $0x210] sm:$0xff]
          %v425 = vld [vmem:[%s308 + $0x218] sm:$0xff]
          %v426 = vld [vmem:[%s308 + $0x220] sm:$0xff]
          %v427 = vld [vmem:[%s308 + $0x228] sm:$0xff]
          %v428 = vld [vmem:[%s308 + $0x230] sm:$0xff]
          %v429 = vld [vmem:[%s308 + $0x238] sm:$0xff]
          %v430 = vld [vmem:[%s308 + $0x240] sm:$0xff]
          %v431 = vld [vmem:[%s308 + $0x248] sm:$0xff]
          %v432 = vld [vmem:[%s308 + $0x250] sm:$0xff]
          %v433 = vld [vmem:[#allocation10] sm:$0xff]
          %v434 = vld [vmem:[#allocation10 + $0x8] sm:$0xff]
          %v435 = vld [vmem:[#allocation10 + $0x10] sm:$0xff]
          %v436 = vld [vmem:[#allocation10 + $0x18] sm:$0xff]
          %v437 = vld [vmem:[#allocation10 + $0x20] sm:$0xff]
          %v438 = vld [vmem:[#allocation10 + $0x28] sm:$0xff]
          %v439 = vld [vmem:[#allocation10 + $0x30] sm:$0xff]
          %v440 = vld [vmem:[#allocation10 + $0x38] sm:$0xff]
          %v441 = vld [vmem:[#allocation10 + $0x40] sm:$0xff]
          %v442 = vld [vmem:[#allocation10 + $0x48] sm:$0xff]
          %v443 = vld [vmem:[#allocation10 + $0x50] sm:$0xff]
          %v444 = vld [vmem:[#allocation10 + $0x58] sm:$0xff]
          %v445 = vld [vmem:[#allocation10 + $0x60] sm:$0xff]
          %v446 = vld [vmem:[#allocation10 + $0x68] sm:$0xff]
          %v447 = vld [vmem:[#allocation10 + $0x70] sm:$0xff]
          %v448 = vld [vmem:[#allocation10 + $0x78] sm:$0xff]
          %v449 = vld [vmem:[#allocation10 + $0x80] sm:$0xff]
          %v450 = vld [vmem:[#allocation10 + $0x88] sm:$0xff]
          %v451 = vld [vmem:[#allocation10 + $0x90] sm:$0xff]
          %v452 = vld [vmem:[#allocation10 + $0x98] sm:$0xff]
          %v453 = vld [vmem:[#allocation10 + $0xa0] sm:$0xff]
          %v454 = vld [vmem:[#allocation10 + $0xa8] sm:$0xff]
          %v455 = vld [vmem:[#allocation10 + $0xb0] sm:$0xff]
          %v456 = vld [vmem:[#allocation10 + $0xb8] sm:$0xff]
          %v457 = vld [vmem:[#allocation10 + $0xc0] sm:$0xff]
          %v458 = vld [vmem:[#allocation10 + $0xc8] sm:$0xff]
          %v459 = vld [vmem:[#allocation10 + $0xd0] sm:$0xff]
          %v460 = vld [vmem:[#allocation10 + $0xd8] sm:$0xff]
          %v461 = vld [vmem:[#allocation10 + $0xe0] sm:$0xff]
          %v462 = vld [vmem:[#allocation10 + $0xe8] sm:$0xff]
          %v463 = vld [vmem:[#allocation10 + $0xf0] sm:$0xff]
          %v464 = vld [vmem:[#allocation10 + $0xf8] sm:$0xff]
          %v465 = vld [vmem:[#allocation10 + $0x100] sm:$0xff]
          %v466 = vld [vmem:[#allocation10 + $0x108] sm:$0xff]
          %v467 = vld [vmem:[#allocation10 + $0x110] sm:$0xff]
          %v468 = vld [vmem:[#allocation10 + $0x118] sm:$0xff]
          %v469 = vld [vmem:[#allocation10 + $0x120] sm:$0xff]
          %v470 = vld [vmem:[#allocation10 + $0x128] sm:$0xff]
          %v471 = vld [vmem:[#allocation10 + $0x130] sm:$0xff]
          %v472 = vld [vmem:[#allocation10 + $0x138] sm:$0xff]
          %v473 = vld [vmem:[#allocation10 + $0x140] sm:$0xff]
          %v474 = vld [vmem:[#allocation10 + $0x148] sm:$0xff]
          %v475 = vld [vmem:[#allocation10 + $0x150] sm:$0xff]
          %v476 = vld [vmem:[#allocation10 + $0x158] sm:$0xff]
          %v477 = vld [vmem:[#allocation10 + $0x160] sm:$0xff]
          %v478 = vld [vmem:[#allocation10 + $0x168] sm:$0xff]
          %v479 = vld [vmem:[#allocation10 + $0x170] sm:$0xff]
          %v480 = vld [vmem:[#allocation10 + $0x178] sm:$0xff]
          %v481 = vld [vmem:[#allocation10 + $0x180] sm:$0xff]
          %v482 = vld [vmem:[#allocation10 + $0x188] sm:$0xff]
          %v483 = vld [vmem:[#allocation10 + $0x190] sm:$0xff]
          %v484 = vld [vmem:[#allocation10 + $0x198] sm:$0xff]
          %v485 = vld [vmem:[#allocation10 + $0x1a0] sm:$0xff]
          %v486 = vld [vmem:[#allocation10 + $0x1a8] sm:$0xff]
          %v487 = vld [vmem:[#allocation10 + $0x1b0] sm:$0xff]
          %v488 = vld [vmem:[#allocation10 + $0x1b8] sm:$0xff]
          %v489 = vld [vmem:[#allocation10 + $0x1c0] sm:$0xff]
          %v490 = vld [vmem:[#allocation10 + $0x1c8] sm:$0xff]
          %v491 = vld [vmem:[#allocation10 + $0x1d0] sm:$0xff]
          %v492 = vld [vmem:[#allocation10 + $0x1d8] sm:$0xff]
          %v493 = vld [vmem:[#allocation10 + $0x1e0] sm:$0xff]
          %v494 = vld [vmem:[#allocation10 + $0x1e8] sm:$0xff]
          %v495 = vld [vmem:[#allocation10 + $0x1f0] sm:$0xff]
          %v496 = vld [vmem:[#allocation10 + $0x1f8] sm:$0xff]
          %v497 = vld [vmem:[#allocation10 + $0x200] sm:$0xff]
          %v498 = vld [vmem:[#allocation10 + $0x208] sm:$0xff]
          %v499 = vld [vmem:[#allocation10 + $0x210] sm:$0xff]
          %v500 = vld [vmem:[#allocation10 + $0x218] sm:$0xff]
          %v501 = vld [vmem:[#allocation10 + $0x220] sm:$0xff]
          %v502 = vld [vmem:[#allocation10 + $0x228] sm:$0xff]
          %v503 = vld [vmem:[#allocation10 + $0x230] sm:$0xff]
          %v504 = vld [vmem:[#allocation10 + $0x238] sm:$0xff]
          %v505 = vld [vmem:[#allocation10 + $0x240] sm:$0xff]
          %v506 = vld [vmem:[#allocation10 + $0x248] sm:$0xff]
          %v507 = vld [vmem:[#allocation10 + $0x250] sm:$0xff]
          %v508 = vld [vmem:[#allocation10 + $0x258] sm:$0xff]
          %v509 = vld [vmem:[#allocation10 + $0x260] sm:$0xff]
          %v510 = vld [vmem:[#allocation10 + $0x268] sm:$0xff]
          %v511 = vld [vmem:[#allocation10 + $0x270] sm:$0xff]
          %v512 = vld [vmem:[#allocation10 + $0x278] sm:$0xff]
          %v514 = vlaneseq
          %v515 = vshrl.u32 %v514, 7
          %v516 = vsub.s32 0, %v515
          %v517 = vrot.slane %v357, %v516
          %v518 = vlaneseq
          %v519 = vshrl.u32 %v518, 7
          %v520 = vsub.s32 1, %v519
          %v521 = vrot.slane %v357, %v520
          %vm524 = vcmask 523264
          %v526 = vsel %vm524, %v360, 0
          %v529 = vsel %vm524, %v363, 0
          %v532 = vsel %vm524, %v366, 0
          %v535 = vsel %vm524, %v369, 0
          %v538 = vsel %vm524, %v372, 0
          %v541 = vsel %vm524, %v375, 0
          %v544 = vsel %vm524, %v378, 0
          %v547 = vsel %vm524, %v381, 0
          %v550 = vsel %vm524, %v384, 0
          %v553 = vsel %vm524, %v387, 0
          %v556 = vsel %vm524, %v390, 0
          %v559 = vsel %vm524, %v393, 0
          %v562 = vsel %vm524, %v396, 0
          %v565 = vsel %vm524, %v399, 0
          %v568 = vsel %vm524, %v402, 0
          %v571 = vsel %vm524, %v405, 0
          %v574 = vsel %vm524, %v408, 0
          %v577 = vsel %vm524, %v411, 0
          %v580 = vsel %vm524, %v414, 0
          %v583 = vsel %vm524, %v417, 0
          %v586 = vsel %vm524, %v420, 0
          %v589 = vsel %vm524, %v423, 0
          %v592 = vsel %vm524, %v426, 0
          %v595 = vsel %vm524, %v429, 0
          %v598 = vsel %vm524, %v432, 0
          %600 = vmatprep.subr.mxu0 %v434
          %601 = vmatpush1.msra.mxu0 %v433
          %602 = vmatprep.subr.mxu0 %v436
          %603 = vmatpush1.msra.mxu0 %v435
          %604 = vmatprep.subr.mxu0 %v438
          %605 = vmatpush1.msra.mxu0 %v437
          %606 = vmatprep.subr.mxu0 %v440
          %607 = vmatpush1.msra.mxu0 %v439
          %608 = vmatprep.subr.mxu0 %v442
          %609 = vmatpush1.msra.mxu0 %v441
          %610 = vmatprep.subr.mxu0 %v444
          %611 = vmatpush1.msra.mxu0 %v443
          %612 = vmatprep.subr.mxu0 %v446
          %613 = vmatpush1.msra.mxu0 %v445
          %614 = vmatprep.subr.mxu0 %v448
          %615 = vmatpush1.msra.mxu0 %v447
          %616 = vmatprep.subr.mxu0 %v450
          %617 = vmatpush1.msra.mxu0 %v449
          %618 = vmatprep.subr.mxu0 %v452
          %619 = vmatpush1.msra.mxu0 %v451
          %620 = vmatprep.subr.mxu0 %v454
          %621 = vmatpush1.msra.mxu0 %v453
          %622 = vmatprep.subr.mxu0 %v456
          %623 = vmatpush1.msra.mxu0 %v455
          %624 = vmatprep.subr.mxu0 %v458
          %625 = vmatpush1.msra.mxu0 %v457
          %626 = vmatprep.subr.mxu0 %v460
          %627 = vmatpush1.msra.mxu0 %v459
          %628 = vmatprep.subr.mxu0 %v462
          %629 = vmatpush1.msra.mxu0 %v461
          %630 = vmatprep.subr.mxu0 %v464
          %631 = vmatpush1.msra.mxu0 %v463
          %632 = vmatprep.subr.mxu0 %v466
          %633 = vmatpush1.msra.mxu0 %v465
          %634 = vmatprep.subr.mxu0 %v468
          %635 = vmatpush1.msra.mxu0 %v467
          %636 = vmatprep.subr.mxu0 %v470
          %637 = vmatpush1.msra.mxu0 %v469
          %638 = vmatprep.subr.mxu0 %v472
          %639 = vmatpush1.msra.mxu0 %v471
          %640 = vmatprep.subr.mxu0 %v474
          %641 = vmatpush1.msra.mxu0 %v473
          %642 = vmatprep.subr.mxu0 %v476
          %643 = vmatpush1.msra.mxu0 %v475
          %644 = vmatprep.subr.mxu0 %v478
          %645 = vmatpush1.msra.mxu0 %v477
          %646 = vmatprep.subr.mxu0 %v480
          %647 = vmatpush1.msra.mxu0 %v479
          %648 = vmatprep.subr.mxu0 %v482
          %649 = vmatpush1.msra.mxu0 %v481
          %650 = vmatprep.subr.mxu0 %v484
          %651 = vmatpush1.msra.mxu0 %v483
          %652 = vmatprep.subr.mxu0 %v486
          %653 = vmatpush1.msra.mxu0 %v485
          %654 = vmatprep.subr.mxu0 %v488
          %655 = vmatpush1.msra.mxu0 %v487
          %656 = vmatprep.subr.mxu0 %v490
          %657 = vmatpush1.msra.mxu0 %v489
          %658 = vmatprep.subr.mxu0 %v492
          %659 = vmatpush1.msra.mxu0 %v491
          %660 = vmatprep.subr.mxu0 %v494
          %661 = vmatpush1.msra.mxu0 %v493
          %662 = vmatprep.subr.mxu0 %v496
          %663 = vmatpush1.msra.mxu0 %v495
          %664 = vmatprep.mubr.f32.mxu0 %v359
          %665 = vmatmul.mubr.f32.gmra.mrb[0].mxu0 %v358
          %v666 = vpop.f32.mrb[0].mxu0
          %v667 = vadd.f32 %v517, %v666
          %v668 = vpop.f32.mrb[0].mxu0
          %v669 = vadd.f32 %v521, %v668
          %670 = vmatprep.mubr.f32.mxu0 %v362
          %671 = vmatmul.mubr.f32.gmra.mrb[0].mxu0 %v361
          %v672 = vpop.f32.mrb[0].mxu0
          %v673 = vadd.f32 %v517, %v672
          %v674 = vpop.f32.mrb[0].mxu0
          %v675 = vadd.f32 %v521, %v674
          %676 = vmatprep.mubr.f32.mxu0 %v365
          %677 = vmatmul.mubr.f32.gmra.mrb[0].mxu0 %v364
          %v678 = vpop.f32.mrb[0].mxu0
          %v679 = vadd.f32 %v517, %v678
          %v680 = vpop.f32.mrb[0].mxu0
          %v681 = vadd.f32 %v521, %v680
          %682 = vmatprep.mubr.f32.mxu0 %v368
          %683 = vmatmul.mubr.f32.gmra.mrb[0].mxu0 %v367
          %v684 = vpop.f32.mrb[0].mxu0
          %v685 = vadd.f32 %v517, %v684
          %v686 = vpop.f32.mrb[0].mxu0
          %v687 = vadd.f32 %v521, %v686
          %688 = vmatprep.mubr.f32.mxu0 %v371
          %689 = vmatmul.mubr.f32.gmra.mrb[0].mxu0 %v370
          %v690 = vpop.f32.mrb[0].mxu0
          %v691 = vadd.f32 %v517, %v690
          %v692 = vpop.f32.mrb[0].mxu0
          %v693 = vadd.f32 %v521, %v692
          %694 = vmatprep.mubr.f32.mxu0 %v374
          %695 = vmatmul.mubr.f32.gmra.mrb[0].mxu0 %v373
          %v696 = vpop.f32.mrb[0].mxu0
          %v697 = vadd.f32 %v517, %v696
          %v698 = vpop.f32.mrb[0].mxu0
          %v699 = vadd.f32 %v521, %v698
          %700 = vmatprep.mubr.f32.mxu0 %v377
          %701 = vmatmul.mubr.f32.gmra.mrb[0].mxu0 %v376
          %v702 = vpop.f32.mrb[0].mxu0
          %v703 = vadd.f32 %v517, %v702
          %v704 = vpop.f32.mrb[0].mxu0
          %v705 = vadd.f32 %v521, %v704
          %706 = vmatprep.mubr.f32.mxu0 %v380
          %707 = vmatmul.mubr.f32.gmra.mrb[0].mxu0 %v379
          %v708 = vpop.f32.mrb[0].mxu0
          %v709 = vadd.f32 %v517, %v708
          %v710 = vpop.f32.mrb[0].mxu0
          %v711 = vadd.f32 %v521, %v710
          %712 = vmatprep.mubr.f32.mxu0 %v383
          %713 = vmatmul.mubr.f32.gmra.mrb[0].mxu0 %v382
          %v714 = vpop.f32.mrb[0].mxu0
          %v715 = vadd.f32 %v517, %v714
          %v716 = vpop.f32.mrb[0].mxu0
          %v717 = vadd.f32 %v521, %v716
          %718 = vmatprep.mubr.f32.mxu0 %v386
          %719 = vmatmul.mubr.f32.gmra.mrb[0].mxu0 %v385
          %v720 = vpop.f32.mrb[0].mxu0
          %v721 = vadd.f32 %v517, %v720
          %v722 = vpop.f32.mrb[0].mxu0
          %v723 = vadd.f32 %v521, %v722
          %724 = vmatprep.mubr.f32.mxu0 %v389
          %725 = vmatmul.mubr.f32.gmra.mrb[0].mxu0 %v388
          %v726 = vpop.f32.mrb[0].mxu0
          %v727 = vadd.f32 %v517, %v726
          %v728 = vpop.f32.mrb[0].mxu0
          %v729 = vadd.f32 %v521, %v728
          %730 = vmatprep.mubr.f32.mxu0 %v392
          %731 = vmatmul.mubr.f32.gmra.mrb[0].mxu0 %v391
          %v732 = vpop.f32.mrb[0].mxu0
          %v733 = vadd.f32 %v517, %v732
          %v734 = vpop.f32.mrb[0].mxu0
          %v735 = vadd.f32 %v521, %v734
          %736 = vmatprep.mubr.f32.mxu0 %v395
          %737 = vmatmul.mubr.f32.gmra.mrb[0].mxu0 %v394
          %v738 = vpop.f32.mrb[0].mxu0
          %v739 = vadd.f32 %v517, %v738
          %v740 = vpop.f32.mrb[0].mxu0
          %v741 = vadd.f32 %v521, %v740
          %742 = vmatprep.mubr.f32.mxu0 %v398
          %743 = vmatmul.mubr.f32.gmra.mrb[0].mxu0 %v397
          %v744 = vpop.f32.mrb[0].mxu0
          %v745 = vadd.f32 %v517, %v744
          %v746 = vpop.f32.mrb[0].mxu0
          %v747 = vadd.f32 %v521, %v746
          %748 = vmatprep.mubr.f32.mxu0 %v401
          %749 = vmatmul.mubr.f32.gmra.mrb[0].mxu0 %v400
          %v750 = vpop.f32.mrb[0].mxu0
          %v751 = vadd.f32 %v517, %v750
          %v752 = vpop.f32.mrb[0].mxu0
          %v753 = vadd.f32 %v521, %v752
          %754 = vmatprep.mubr.f32.mxu0 %v404
          %755 = vmatmul.mubr.f32.gmra.mrb[0].mxu0 %v403
          %v756 = vpop.f32.mrb[0].mxu0
          %v757 = vadd.f32 %v517, %v756
          %v758 = vpop.f32.mrb[0].mxu0
          %v759 = vadd.f32 %v521, %v758
          %760 = vmatprep.mubr.f32.mxu0 %v407
          %761 = vmatmul.mubr.f32.gmra.mrb[0].mxu0 %v406
          %v762 = vpop.f32.mrb[0].mxu0
          %v763 = vadd.f32 %v517, %v762
          %v764 = vpop.f32.mrb[0].mxu0
          %v765 = vadd.f32 %v521, %v764
          %766 = vmatprep.mubr.f32.mxu0 %v410
          %767 = vmatmul.mubr.f32.gmra.mrb[0].mxu0 %v409
          %v768 = vpop.f32.mrb[0].mxu0
          %v769 = vadd.f32 %v517, %v768
          %v770 = vpop.f32.mrb[0].mxu0
          %v771 = vadd.f32 %v521, %v770
          %772 = vmatprep.mubr.f32.mxu0 %v413
          %773 = vmatmul.mubr.f32.gmra.mrb[0].mxu0 %v412
          %v774 = vpop.f32.mrb[0].mxu0
          %v775 = vadd.f32 %v517, %v774
          %v776 = vpop.f32.mrb[0].mxu0
          %v777 = vadd.f32 %v521, %v776
          %778 = vmatprep.mubr.f32.mxu0 %v416
          %779 = vmatmul.mubr.f32.gmra.mrb[0].mxu0 %v415
          %v780 = vpop.f32.mrb[0].mxu0
          %v781 = vadd.f32 %v517, %v780
          %v782 = vpop.f32.mrb[0].mxu0
          %v783 = vadd.f32 %v521, %v782
          %784 = vmatprep.mubr.f32.mxu0 %v419
          %785 = vmatmul.mubr.f32.gmra.mrb[0].mxu0 %v418
          %v786 = vpop.f32.mrb[0].mxu0
          %v787 = vadd.f32 %v517, %v786
          %v788 = vpop.f32.mrb[0].mxu0
          %v789 = vadd.f32 %v521, %v788
          %790 = vmatprep.mubr.f32.mxu0 %v422
          %791 = vmatmul.mubr.f32.gmra.mrb[0].mxu0 %v421
          %v792 = vpop.f32.mrb[0].mxu0
          %v793 = vadd.f32 %v517, %v792
          %v794 = vpop.f32.mrb[0].mxu0
          %v795 = vadd.f32 %v521, %v794
          %796 = vmatprep.mubr.f32.mxu0 %v425
          %797 = vmatmul.mubr.f32.gmra.mrb[0].mxu0 %v424
          %v798 = vpop.f32.mrb[0].mxu0
          %v799 = vadd.f32 %v517, %v798
          %v800 = vpop.f32.mrb[0].mxu0
          %v801 = vadd.f32 %v521, %v800
          %802 = vmatprep.mubr.f32.mxu0 %v428
          %803 = vmatmul.mubr.f32.gmra.mrb[0].mxu0 %v427
          %v804 = vpop.f32.mrb[0].mxu0
          %v805 = vadd.f32 %v517, %v804
          %v806 = vpop.f32.mrb[0].mxu0
          %v807 = vadd.f32 %v521, %v806
          %808 = vmatprep.mubr.f32.mxu0 %v431
          %809 = vmatmul.mubr.f32.gmra.mrb[0].mxu0 %v430
          %v810 = vpop.f32.mrb[0].mxu0
          %v811 = vadd.f32 %v517, %v810
          %v812 = vpop.f32.mrb[0].mxu0
          %v813 = vadd.f32 %v521, %v812
          %814 = vdwg.mxu0
          %815 = vmatprep.subr.mxu0 %v498
          %816 = vmatpush1.msra.mxu0 %v497
          %817 = vmatprep.subr.mxu0 %v500
          %818 = vmatpush1.msra.mxu0 %v499
          %819 = vmatprep.subr.mxu0 %v502
          %820 = vmatpush1.msra.mxu0 %v501
          %821 = vmatprep.subr.mxu0 %v504
          %822 = vmatpush1.msra.mxu0 %v503
          %823 = vmatprep.subr.mxu0 %v506
          %824 = vmatpush1.msra.mxu0 %v505
          %825 = vmatprep.subr.mxu0 %v508
          %826 = vmatpush1.msra.mxu0 %v507
          %827 = vmatprep.subr.mxu0 %v510
          %828 = vmatpush1.msra.mxu0 %v509
          %829 = vmatprep.subr.mxu0 %v512
          %830 = vmatpush1.msra.mxu0 %v511
          %831 = vmatprep.subr.mxu0 0.0
          %832 = vmatpush1.msra.mxu0 0.0
          %833 = vmatprep.subr.mxu0 0.0
          %834 = vmatpush1.msra.mxu0 0.0
          %835 = vmatprep.subr.mxu0 0.0
          %836 = vmatpush1.msra.mxu0 0.0
          %837 = vmatprep.subr.mxu0 0.0
          %838 = vmatpush1.msra.mxu0 0.0
          %839 = vmatprep.subr.mxu0 0.0
          %840 = vmatpush1.msra.mxu0 0.0
          %841 = vmatprep.subr.mxu0 0.0
          %842 = vmatpush1.msra.mxu0 0.0
          %843 = vmatprep.subr.mxu0 0.0
          %844 = vmatpush1.msra.mxu0 0.0
          %845 = vmatprep.subr.mxu0 0.0
          %846 = vmatpush1.msra.mxu0 0.0
          %847 = vmatprep.subr.mxu0 0.0
          %848 = vmatpush1.msra.mxu0 0.0
          %849 = vmatprep.subr.mxu0 0.0
          %850 = vmatpush1.msra.mxu0 0.0
          %851 = vmatprep.subr.mxu0 0.0
          %852 = vmatpush1.msra.mxu0 0.0
          %853 = vmatprep.subr.mxu0 0.0
          %854 = vmatpush1.msra.mxu0 0.0
          %855 = vmatprep.subr.mxu0 0.0
          %856 = vmatpush1.msra.mxu0 0.0
          %857 = vmatprep.subr.mxu0 0.0
          %858 = vmatpush1.msra.mxu0 0.0
          %859 = vmatprep.subr.mxu0 0.0
          %860 = vmatpush1.msra.mxu0 0.0
          %861 = vmatprep.subr.mxu0 0.0
          %862 = vmatpush1.msra.mxu0 0.0
          %863 = vmatprep.subr.mxu0 0.0
          %864 = vmatpush1.msra.mxu0 0.0
          %865 = vmatprep.subr.mxu0 0.0
          %866 = vmatpush1.msra.mxu0 0.0
          %867 = vmatprep.subr.mxu0 0.0
          %868 = vmatpush1.msra.mxu0 0.0
          %869 = vmatprep.subr.mxu0 0.0
          %870 = vmatpush1.msra.mxu0 0.0
          %871 = vmatprep.subr.mxu0 0.0
          %872 = vmatpush1.msra.mxu0 0.0
          %873 = vmatprep.subr.mxu0 0.0
          %874 = vmatpush1.msra.mxu0 0.0
          %875 = vmatprep.subr.mxu0 0.0
          %876 = vmatpush1.msra.mxu0 0.0
          %877 = vmatprep.subr.mxu0 0.0
          %878 = vmatpush1.msra.mxu0 0.0
          %879 = vmatprep.mubr.f32.mxu0 0.0
          %880 = vmatmul.mubr.f32.gmra.mrb[0].mxu0 %v526
          %v881 = vpop.f32.mrb[0].mxu0
          %v882 = vadd.f32 %v667, %v881
          %v883 = vpop.f32.mrb[0].mxu0
          %v884 = vadd.f32 %v669, %v883
          %885 = vmatprep.mubr.f32.mxu0 0.0
          %886 = vmatmul.mubr.f32.gmra.mrb[0].mxu0 %v529
          %v887 = vpop.f32.mrb[0].mxu0
          %v888 = vadd.f32 %v673, %v887
          %v889 = vpop.f32.mrb[0].mxu0
          %v890 = vadd.f32 %v675, %v889
          %891 = vmatprep.mubr.f32.mxu0 0.0
          %892 = vmatmul.mubr.f32.gmra.mrb[0].mxu0 %v532
          %v893 = vpop.f32.mrb[0].mxu0
          %v894 = vadd.f32 %v679, %v893
          %v895 = vpop.f32.mrb[0].mxu0
          %v896 = vadd.f32 %v681, %v895
          %897 = vmatprep.mubr.f32.mxu0 0.0
          %898 = vmatmul.mubr.f32.gmra.mrb[0].mxu0 %v535
          %v899 = vpop.f32.mrb[0].mxu0
          %v900 = vadd.f32 %v685, %v899
          %v901 = vpop.f32.mrb[0].mxu0
          %v902 = vadd.f32 %v687, %v901
          %903 = vmatprep.mubr.f32.mxu0 0.0
          %904 = vmatmul.mubr.f32.gmra.mrb[0].mxu0 %v538
          %v905 = vpop.f32.mrb[0].mxu0
          %v906 = vadd.f32 %v691, %v905
          %v907 = vpop.f32.mrb[0].mxu0
          %v908 = vadd.f32 %v693, %v907
          %909 = vmatprep.mubr.f32.mxu0 0.0
          %910 = vmatmul.mubr.f32.gmra.mrb[0].mxu0 %v541
          %v911 = vpop.f32.mrb[0].mxu0
          %v912 = vadd.f32 %v697, %v911
          %v913 = vpop.f32.mrb[0].mxu0
          %v914 = vadd.f32 %v699, %v913
          %915 = vmatprep.mubr.f32.mxu0 0.0
          %916 = vmatmul.mubr.f32.gmra.mrb[0].mxu0 %v544
          %v917 = vpop.f32.mrb[0].mxu0
          %v918 = vadd.f32 %v703, %v917
          %v919 = vpop.f32.mrb[0].mxu0
          %v920 = vadd.f32 %v705, %v919
          %921 = vmatprep.mubr.f32.mxu0 0.0
          %922 = vmatmul.mubr.f32.gmra.mrb[0].mxu0 %v547
          %v923 = vpop.f32.mrb[0].mxu0
          %v924 = vadd.f32 %v709, %v923
          %v925 = vpop.f32.mrb[0].mxu0
          %v926 = vadd.f32 %v711, %v925
          %927 = vmatprep.mubr.f32.mxu0 0.0
          %928 = vmatmul.mubr.f32.gmra.mrb[0].mxu0 %v550
          %v929 = vpop.f32.mrb[0].mxu0
          %v930 = vadd.f32 %v715, %v929
          %v931 = vpop.f32.mrb[0].mxu0
          %v932 = vadd.f32 %v717, %v931
          %933 = vmatprep.mubr.f32.mxu0 0.0
          %934 = vmatmul.mubr.f32.gmra.mrb[0].mxu0 %v553
          %v935 = vpop.f32.mrb[0].mxu0
          %v936 = vadd.f32 %v721, %v935
          %v937 = vpop.f32.mrb[0].mxu0
          %v938 = vadd.f32 %v723, %v937
          %939 = vmatprep.mubr.f32.mxu0 0.0
          %940 = vmatmul.mubr.f32.gmra.mrb[0].mxu0 %v556
          %v941 = vpop.f32.mrb[0].mxu0
          %v942 = vadd.f32 %v727, %v941
          %v943 = vpop.f32.mrb[0].mxu0
          %v944 = vadd.f32 %v729, %v943
          %945 = vmatprep.mubr.f32.mxu0 0.0
          %946 = vmatmul.mubr.f32.gmra.mrb[0].mxu0 %v559
          %v947 = vpop.f32.mrb[0].mxu0
          %v948 = vadd.f32 %v733, %v947
          %v949 = vpop.f32.mrb[0].mxu0
          %v950 = vadd.f32 %v735, %v949
          %951 = vmatprep.mubr.f32.mxu0 0.0
          %952 = vmatmul.mubr.f32.gmra.mrb[0].mxu0 %v562
          %v953 = vpop.f32.mrb[0].mxu0
          %v954 = vadd.f32 %v739, %v953
          %v955 = vpop.f32.mrb[0].mxu0
          %v956 = vadd.f32 %v741, %v955
          %957 = vmatprep.mubr.f32.mxu0 0.0
          %958 = vmatmul.mubr.f32.gmra.mrb[0].mxu0 %v565
          %v959 = vpop.f32.mrb[0].mxu0
          %v960 = vadd.f32 %v745, %v959
          %v961 = vpop.f32.mrb[0].mxu0
          %v962 = vadd.f32 %v747, %v961
          %963 = vmatprep.mubr.f32.mxu0 0.0
          %964 = vmatmul.mubr.f32.gmra.mrb[0].mxu0 %v568
          %v965 = vpop.f32.mrb[0].mxu0
          %v966 = vadd.f32 %v751, %v965
          %v967 = vpop.f32.mrb[0].mxu0
          %v968 = vadd.f32 %v753, %v967
          %969 = vmatprep.mubr.f32.mxu0 0.0
          %970 = vmatmul.mubr.f32.gmra.mrb[0].mxu0 %v571
          %v971 = vpop.f32.mrb[0].mxu0
          %v972 = vadd.f32 %v757, %v971
          %v973 = vpop.f32.mrb[0].mxu0
          %v974 = vadd.f32 %v759, %v973
          %975 = vmatprep.mubr.f32.mxu0 0.0
          %976 = vmatmul.mubr.f32.gmra.mrb[0].mxu0 %v574
          %v977 = vpop.f32.mrb[0].mxu0
          %v978 = vadd.f32 %v763, %v977
          %v979 = vpop.f32.mrb[0].mxu0
          %v980 = vadd.f32 %v765, %v979
          %981 = vmatprep.mubr.f32.mxu0 0.0
          %982 = vmatmul.mubr.f32.gmra.mrb[0].mxu0 %v577
          %v983 = vpop.f32.mrb[0].mxu0
          %v984 = vadd.f32 %v769, %v983
          %v985 = vpop.f32.mrb[0].mxu0
          %v986 = vadd.f32 %v771, %v985
          %987 = vmatprep.mubr.f32.mxu0 0.0
          %988 = vmatmul.mubr.f32.gmra.mrb[0].mxu0 %v580
          %v989 = vpop.f32.mrb[0].mxu0
          %v990 = vadd.f32 %v775, %v989
          %v991 = vpop.f32.mrb[0].mxu0
          %v992 = vadd.f32 %v777, %v991
          %993 = vmatprep.mubr.f32.mxu0 0.0
          %994 = vmatmul.mubr.f32.gmra.mrb[0].mxu0 %v583
          %v995 = vpop.f32.mrb[0].mxu0
          %v996 = vadd.f32 %v781, %v995
          %v997 = vpop.f32.mrb[0].mxu0
          %v998 = vadd.f32 %v783, %v997
          %999 = vmatprep.mubr.f32.mxu0 0.0
          %1000 = vmatmul.mubr.f32.gmra.mrb[0].mxu0 %v586
          %v1001 = vpop.f32.mrb[0].mxu0
          %v1002 = vadd.f32 %v787, %v1001
          %v1003 = vpop.f32.mrb[0].mxu0
          %v1004 = vadd.f32 %v789, %v1003
          %1005 = vmatprep.mubr.f32.mxu0 0.0
          %1006 = vmatmul.mubr.f32.gmra.mrb[0].mxu0 %v589
          %v1007 = vpop.f32.mrb[0].mxu0
          %v1008 = vadd.f32 %v793, %v1007
          %v1009 = vpop.f32.mrb[0].mxu0
          %v1010 = vadd.f32 %v795, %v1009
          %1011 = vmatprep.mubr.f32.mxu0 0.0
          %1012 = vmatmul.mubr.f32.gmra.mrb[0].mxu0 %v592
          %v1013 = vpop.f32.mrb[0].mxu0
          %v1014 = vadd.f32 %v799, %v1013
          %v1015 = vpop.f32.mrb[0].mxu0
          %v1016 = vadd.f32 %v801, %v1015
          %1017 = vmatprep.mubr.f32.mxu0 0.0
          %1018 = vmatmul.mubr.f32.gmra.mrb[0].mxu0 %v595
          %v1019 = vpop.f32.mrb[0].mxu0
          %v1020 = vadd.f32 %v805, %v1019
          %v1021 = vpop.f32.mrb[0].mxu0
          %v1022 = vadd.f32 %v807, %v1021
          %1023 = vmatprep.mubr.f32.mxu0 0.0
          %1024 = vmatmul.mubr.f32.gmra.mrb[0].mxu0 %v598
          %v1025 = vpop.f32.mrb[0].mxu0
          %v1026 = vadd.f32 %v811, %v1025
          %v1027 = vpop.f32.mrb[0].mxu0
          %v1028 = vadd.f32 %v813, %v1027
          %1029 = vdwg.mxu0
          %s1030 = sshra.s32 %s352, 3
          %s1031 = sand.u32 %s352, 7
          %s1032 = smul.u32 %s1030, 2
          %s1033 = smul.addr %s1032, 8
          %s1034 = scalar_lea.vmem [#allocation2], %s1033
          %1035 = vst [vmem:[%s1034] sm:$0xff] %v882
          %1036 = vst [vmem:[%s1034 + $0x8] sm:$0xff] %v884
          %1037 = vst [vmem:[%s1034 + $0x10] sm:$0xff] %v888
          %1038 = vst [vmem:[%s1034 + $0x18] sm:$0xff] %v890
          %1039 = vst [vmem:[%s1034 + $0x20] sm:$0xff] %v894
          %1040 = vst [vmem:[%s1034 + $0x28] sm:$0xff] %v896
          %1041 = vst [vmem:[%s1034 + $0x30] sm:$0xff] %v900
          %1042 = vst [vmem:[%s1034 + $0x38] sm:$0xff] %v902
          %1043 = vst [vmem:[%s1034 + $0x40] sm:$0xff] %v906
          %1044 = vst [vmem:[%s1034 + $0x48] sm:$0xff] %v908
          %1045 = vst [vmem:[%s1034 + $0x50] sm:$0xff] %v912
          %1046 = vst [vmem:[%s1034 + $0x58] sm:$0xff] %v914
          %1047 = vst [vmem:[%s1034 + $0x60] sm:$0xff] %v918
          %1048 = vst [vmem:[%s1034 + $0x68] sm:$0xff] %v920
          %1049 = vst [vmem:[%s1034 + $0x70] sm:$0xff] %v924
          %1050 = vst [vmem:[%s1034 + $0x78] sm:$0xff] %v926
          %1051 = vst [vmem:[%s1034 + $0x80] sm:$0xff] %v930
          %1052 = vst [vmem:[%s1034 + $0x88] sm:$0xff] %v932
          %1053 = vst [vmem:[%s1034 + $0x90] sm:$0xff] %v936
          %1054 = vst [vmem:[%s1034 + $0x98] sm:$0xff] %v938
          %1055 = vst [vmem:[%s1034 + $0xa0] sm:$0xff] %v942
          %1056 = vst [vmem:[%s1034 + $0xa8] sm:$0xff] %v944
          %1057 = vst [vmem:[%s1034 + $0xb0] sm:$0xff] %v948
          %1058 = vst [vmem:[%s1034 + $0xb8] sm:$0xff] %v950
          %1059 = vst [vmem:[%s1034 + $0xc0] sm:$0xff] %v954
          %1060 = vst [vmem:[%s1034 + $0xc8] sm:$0xff] %v956
          %1061 = vst [vmem:[%s1034 + $0xd0] sm:$0xff] %v960
          %1062 = vst [vmem:[%s1034 + $0xd8] sm:$0xff] %v962
          %1063 = vst [vmem:[%s1034 + $0xe0] sm:$0xff] %v966
          %1064 = vst [vmem:[%s1034 + $0xe8] sm:$0xff] %v968
          %1065 = vst [vmem:[%s1034 + $0xf0] sm:$0xff] %v972
          %1066 = vst [vmem:[%s1034 + $0xf8] sm:$0xff] %v974
          %1067 = vst [vmem:[%s1034 + $0x100] sm:$0xff] %v978
          %1068 = vst [vmem:[%s1034 + $0x108] sm:$0xff] %v980
          %1069 = vst [vmem:[%s1034 + $0x110] sm:$0xff] %v984
          %1070 = vst [vmem:[%s1034 + $0x118] sm:$0xff] %v986
          %1071 = vst [vmem:[%s1034 + $0x120] sm:$0xff] %v990
          %1072 = vst [vmem:[%s1034 + $0x128] sm:$0xff] %v992
          %1073 = vst [vmem:[%s1034 + $0x130] sm:$0xff] %v996
          %1074 = vst [vmem:[%s1034 + $0x138] sm:$0xff] %v998
          %1075 = vst [vmem:[%s1034 + $0x140] sm:$0xff] %v1002
          %1076 = vst [vmem:[%s1034 + $0x148] sm:$0xff] %v1004
          %1077 = vst [vmem:[%s1034 + $0x150] sm:$0xff] %v1008
          %1078 = vst [vmem:[%s1034 + $0x158] sm:$0xff] %v1010
          %1079 = vst [vmem:[%s1034 + $0x160] sm:$0xff] %v1014
          %1080 = vst [vmem:[%s1034 + $0x168] sm:$0xff] %v1016
          %1081 = vst [vmem:[%s1034 + $0x170] sm:$0xff] %v1020
          %1082 = vst [vmem:[%s1034 + $0x178] sm:$0xff] %v1022
          %1083 = vst [vmem:[%s1034 + $0x180] sm:$0xff] %v1026
          %1084 = vst [vmem:[%s1034 + $0x188] sm:$0xff] %v1028
          %p1085 = scmp.eq.s32.totalorder %s30, 0
          // Predicated region
          $region65: #{tpu_custom_call.1} parent=63 // pred_check
            %p1086 = pneg %p1085
          $region66: #{tpu_custom_call.1} parent=63 // pred_check_branch
            %1088 = sbr.rel (%p1086) target = $region68
          $region67: #{tpu_custom_call.1} parent=63 // pred_region
            %v1089 = vlaneseq
            %vm1090 = vcmp.ge.s32.totalorder %v1089, 0
            %vm1091 = vcmp.lt.s32.totalorder %v1089, 256
            %vm1092 = vmand %vm1090, %vm1091
            %1093 = vst.msk [vmem:[#allocation3] sm:$0x3] %vm1092, 0.0
            %1094 = vst.msk [vmem:[#allocation4] sm:$0x3] %vm1092, 0.0
          $region68: #{tpu_custom_call.1} parent=63 // pred_fallthru
            _
          %v1095 = vsub.f32 %v882, %v517
          %v1096 = vsub.f32 %v884, %v521
          %v1097 = vsub.f32 %v888, %v517
          %v1098 = vsub.f32 %v890, %v521
          %v1099 = vsub.f32 %v894, %v517
          %v1100 = vsub.f32 %v896, %v521
          %v1101 = vsub.f32 %v900, %v517
          %v1102 = vsub.f32 %v902, %v521
          %v1103 = vsub.f32 %v906, %v517
          %v1104 = vsub.f32 %v908, %v521
          %v1105 = vsub.f32 %v912, %v517
          %v1106 = vsub.f32 %v914, %v521
          %v1107 = vsub.f32 %v918, %v517
          %v1108 = vsub.f32 %v920, %v521
          %v1109 = vsub.f32 %v924, %v517
          %v1110 = vsub.f32 %v926, %v521
          %v1111 = vsub.f32 %v930, %v517
          %v1112 = vsub.f32 %v932, %v521
          %v1113 = vsub.f32 %v936, %v517
          %v1114 = vsub.f32 %v938, %v521
          %v1115 = vsub.f32 %v942, %v517
          %v1116 = vsub.f32 %v944, %v521
          %v1117 = vsub.f32 %v948, %v517
          %v1118 = vsub.f32 %v950, %v521
          %v1119 = vsub.f32 %v954, %v517
          %v1120 = vsub.f32 %v956, %v521
          %v1121 = vsub.f32 %v960, %v517
          %v1122 = vsub.f32 %v962, %v521
          %v1123 = vsub.f32 %v966, %v517
          %v1124 = vsub.f32 %v968, %v521
          %v1125 = vsub.f32 %v972, %v517
          %v1126 = vsub.f32 %v974, %v521
          %v1127 = vsub.f32 %v978, %v517
          %v1128 = vsub.f32 %v980, %v521
          %v1129 = vsub.f32 %v984, %v517
          %v1130 = vsub.f32 %v986, %v521
          %v1131 = vsub.f32 %v990, %v517
          %v1132 = vsub.f32 %v992, %v521
          %v1133 = vsub.f32 %v996, %v517
          %v1134 = vsub.f32 %v998, %v521
          %v1135 = vsub.f32 %v1002, %v517
          %v1136 = vsub.f32 %v1004, %v521
          %v1137 = vsub.f32 %v1008, %v517
          %v1138 = vsub.f32 %v1010, %v521
          %v1139 = vsub.f32 %v1014, %v517
          %v1140 = vsub.f32 %v1016, %v521
          %v1141 = vsub.f32 %v1020, %v517
          %v1142 = vsub.f32 %v1022, %v521
          %v1143 = vsub.f32 %v1026, %v517
          %v1144 = vsub.f32 %v1028, %v521
          %v1145 = vld [vmem:[#allocation3] sm:$0x3]
          %v1146 = vadd.f32 %v1095, %v1097
          %v1147 = vadd.f32 %v1146, %v1099
          %v1148 = vadd.f32 %v1147, %v1101
          %v1149 = vadd.f32 %v1148, %v1103
          %v1150 = vadd.f32 %v1149, %v1105
          %v1151 = vadd.f32 %v1150, %v1107
          %v1152 = vadd.f32 %v1151, %v1109
          %v1153 = vadd.f32 %v1152, %v1111
          %v1154 = vadd.f32 %v1153, %v1113
          %v1155 = vadd.f32 %v1154, %v1115
          %v1156 = vadd.f32 %v1155, %v1117
          %v1157 = vadd.f32 %v1156, %v1119
          %v1158 = vadd.f32 %v1157, %v1121
          %v1159 = vadd.f32 %v1158, %v1123
          %v1160 = vadd.f32 %v1159, %v1125
          %v1161 = vadd.f32 %v1160, %v1127
          %v1162 = vadd.f32 %v1161, %v1129
          %v1163 = vadd.f32 %v1162, %v1131
          %v1164 = vadd.f32 %v1163, %v1133
          %v1165 = vadd.f32 %v1164, %v1135
          %v1166 = vadd.f32 %v1165, %v1137
          %v1167 = vadd.f32 %v1166, %v1139
          %v1168 = vadd.f32 %v1167, %v1141
          %v1169 = vadd.f32 %v1168, %v1143
          %v1170 = vrot.slane %v1169, 4
          %v1171 = vadd.f32 %v1169, %v1170
          %v1172 = vrot.slane %v1171, 2
          %v1173 = vadd.f32 %v1171, %v1172
          %v1174 = vrot.slane %v1173, 1
          %v1175 = vadd.f32 %v1173, %v1174
          %v1176 = vadd.f32 %v1096, %v1098
          %v1177 = vadd.f32 %v1176, %v1100
          %v1178 = vadd.f32 %v1177, %v1102
          %v1179 = vadd.f32 %v1178, %v1104
          %v1180 = vadd.f32 %v1179, %v1106
          %v1181 = vadd.f32 %v1180, %v1108
          %v1182 = vadd.f32 %v1181, %v1110
          %v1183 = vadd.f32 %v1182, %v1112
          %v1184 = vadd.f32 %v1183, %v1114
          %v1185 = vadd.f32 %v1184, %v1116
          %v1186 = vadd.f32 %v1185, %v1118
          %v1187 = vadd.f32 %v1186, %v1120
          %v1188 = vadd.f32 %v1187, %v1122
          %v1189 = vadd.f32 %v1188, %v1124
          %v1190 = vadd.f32 %v1189, %v1126
          %v1191 = vadd.f32 %v1190, %v1128
          %v1192 = vadd.f32 %v1191, %v1130
          %v1193 = vadd.f32 %v1192, %v1132
          %v1194 = vadd.f32 %v1193, %v1134
          %v1195 = vadd.f32 %v1194, %v1136
          %v1196 = vadd.f32 %v1195, %v1138
          %v1197 = vadd.f32 %v1196, %v1140
          %v1198 = vadd.f32 %v1197, %v1142
          %v1199 = vadd.f32 %v1198, %v1144
          %v1200 = vrot.slane %v1199, 4
          %v1201 = vadd.f32 %v1199, %v1200
          %v1202 = vrot.slane %v1201, 2
          %v1203 = vadd.f32 %v1201, %v1202
          %v1204 = vrot.slane %v1203, 1
          %v1205 = vadd.f32 %v1203, %v1204
          %v1208 = vcombine.low %v1175, %v1205
          %v1210 = vunpack.c.l.s4 1966171168
          %v1211 = vunpack.c.0.s8 %v1210
          %v1212 = vlaneseq
          %v1213 = vshrl.u32 %v1212, 7
          %v1214 = vsub.s32 %v1211, %v1213
          %v1215 = vrot.slane %v1208, %v1214
          %v1217 = vunpack.c.l.s4 1966171168
          %v1218 = vunpack.c.0.s8 %v1217
          %v1219 = vlaneseq
          %v1220 = vshrl.u32 %v1219, 7
          %v1221 = vsub.s32 %v1218, %v1220
          %v1222 = vrot.slane %v1215, %v1221
          %v1224 = vadd.f32 %v1145, %v1222
          %v1225 = vlaneseq
          %vm1226 = vcmp.ge.s32.totalorder %v1225, 0
          %vm1227 = vcmp.lt.s32.totalorder %v1225, 256
          %vm1228 = vmand %vm1226, %vm1227
          %1229 = vst.msk [vmem:[#allocation3] sm:$0x3] %vm1228, %v1224
          %v1230 = vld [vmem:[#allocation4] sm:$0x3]
          %v1231 = vmul.f32 %v1095, %v1095
          %v1232 = vmul.f32 %v1096, %v1096
          %v1233 = vmul.f32 %v1097, %v1097
          %v1234 = vmul.f32 %v1098, %v1098
          %v1235 = vmul.f32 %v1099, %v1099
          %v1236 = vmul.f32 %v1100, %v1100
          %v1237 = vmul.f32 %v1101, %v1101
          %v1238 = vmul.f32 %v1102, %v1102
          %v1239 = vmul.f32 %v1103, %v1103
          %v1240 = vmul.f32 %v1104, %v1104
          %v1241 = vmul.f32 %v1105, %v1105
          %v1242 = vmul.f32 %v1106, %v1106
          %v1243 = vmul.f32 %v1107, %v1107
          %v1244 = vmul.f32 %v1108, %v1108
          %v1245 = vmul.f32 %v1109, %v1109
          %v1246 = vmul.f32 %v1110, %v1110
          %v1247 = vmul.f32 %v1111, %v1111
          %v1248 = vmul.f32 %v1112, %v1112
          %v1249 = vmul.f32 %v1113, %v1113
          %v1250 = vmul.f32 %v1114, %v1114
          %v1251 = vmul.f32 %v1115, %v1115
          %v1252 = vmul.f32 %v1116, %v1116
          %v1253 = vmul.f32 %v1117, %v1117
          %v1254 = vmul.f32 %v1118, %v1118
          %v1255 = vmul.f32 %v1119, %v1119
          %v1256 = vmul.f32 %v1120, %v1120
          %v1257 = vmul.f32 %v1121, %v1121
          %v1258 = vmul.f32 %v1122, %v1122
          %v1259 = vmul.f32 %v1123, %v1123
          %v1260 = vmul.f32 %v1124, %v1124
          %v1261 = vmul.f32 %v1125, %v1125
          %v1262 = vmul.f32 %v1126, %v1126
          %v1263 = vmul.f32 %v1127, %v1127
          %v1264 = vmul.f32 %v1128, %v1128
          %v1265 = vmul.f32 %v1129, %v1129
          %v1266 = vmul.f32 %v1130, %v1130
          %v1267 = vmul.f32 %v1131, %v1131
          %v1268 = vmul.f32 %v1132, %v1132
          %v1269 = vmul.f32 %v1133, %v1133
          %v1270 = vmul.f32 %v1134, %v1134
          %v1271 = vmul.f32 %v1135, %v1135
          %v1272 = vmul.f32 %v1136, %v1136
          %v1273 = vmul.f32 %v1137, %v1137
          %v1274 = vmul.f32 %v1138, %v1138
          %v1275 = vmul.f32 %v1139, %v1139
          %v1276 = vmul.f32 %v1140, %v1140
          %v1277 = vmul.f32 %v1141, %v1141
          %v1278 = vmul.f32 %v1142, %v1142
          %v1279 = vmul.f32 %v1143, %v1143
          %v1280 = vmul.f32 %v1144, %v1144
          %v1281 = vadd.f32 %v1231, %v1233
          %v1282 = vadd.f32 %v1281, %v1235
          %v1283 = vadd.f32 %v1282, %v1237
          %v1284 = vadd.f32 %v1283, %v1239
          %v1285 = vadd.f32 %v1284, %v1241
          %v1286 = vadd.f32 %v1285, %v1243
          %v1287 = vadd.f32 %v1286, %v1245
          %v1288 = vadd.f32 %v1287, %v1247
          %v1289 = vadd.f32 %v1288, %v1249
          %v1290 = vadd.f32 %v1289, %v1251
          %v1291 = vadd.f32 %v1290, %v1253
          %v1292 = vadd.f32 %v1291, %v1255
          %v1293 = vadd.f32 %v1292, %v1257
          %v1294 = vadd.f32 %v1293, %v1259
          %v1295 = vadd.f32 %v1294, %v1261
          %v1296 = vadd.f32 %v1295, %v1263
          %v1297 = vadd.f32 %v1296, %v1265
          %v1298 = vadd.f32 %v1297, %v1267
          %v1299 = vadd.f32 %v1298, %v1269
          %v1300 = vadd.f32 %v1299, %v1271
          %v1301 = vadd.f32 %v1300, %v1273
          %v1302 = vadd.f32 %v1301, %v1275
          %v1303 = vadd.f32 %v1302, %v1277
          %v1304 = vadd.f32 %v1303, %v1279
          %v1305 = vrot.slane %v1304, 4
          %v1306 = vadd.f32 %v1304, %v1305
          %v1307 = vrot.slane %v1306, 2
          %v1308 = vadd.f32 %v1306, %v1307
          %v1309 = vrot.slane %v1308, 1
          %v1310 = vadd.f32 %v1308, %v1309
          %v1311 = vadd.f32 %v1232, %v1234
          %v1312 = vadd.f32 %v1311, %v1236
          %v1313 = vadd.f32 %v1312, %v1238
          %v1314 = vadd.f32 %v1313, %v1240
          %v1315 = vadd.f32 %v1314, %v1242
          %v1316 = vadd.f32 %v1315, %v1244
          %v1317 = vadd.f32 %v1316, %v1246
          %v1318 = vadd.f32 %v1317, %v1248
          %v1319 = vadd.f32 %v1318, %v1250
          %v1320 = vadd.f32 %v1319, %v1252
          %v1321 = vadd.f32 %v1320, %v1254
          %v1322 = vadd.f32 %v1321, %v1256
          %v1323 = vadd.f32 %v1322, %v1258
          %v1324 = vadd.f32 %v1323, %v1260
          %v1325 = vadd.f32 %v1324, %v1262
          %v1326 = vadd.f32 %v1325, %v1264
          %v1327 = vadd.f32 %v1326, %v1266
          %v1328 = vadd.f32 %v1327, %v1268
          %v1329 = vadd.f32 %v1328, %v1270
          %v1330 = vadd.f32 %v1329, %v1272
          %v1331 = vadd.f32 %v1330, %v1274
          %v1332 = vadd.f32 %v1331, %v1276
          %v1333 = vadd.f32 %v1332, %v1278
          %v1334 = vadd.f32 %v1333, %v1280
          %v1335 = vrot.slane %v1334, 4
          %v1336 = vadd.f32 %v1334, %v1335
          %v1337 = vrot.slane %v1336, 2
          %v1338 = vadd.f32 %v1336, %v1337
          %v1339 = vrot.slane %v1338, 1
          %v1340 = vadd.f32 %v1338, %v1339
          %v1343 = vcombine.low %v1310, %v1340
          %v1345 = vunpack.c.l.s4 1966171168
          %v1346 = vunpack.c.0.s8 %v1345
          %v1347 = vlaneseq
          %v1348 = vshrl.u32 %v1347, 7
          %v1349 = vsub.s32 %v1346, %v1348
          %v1350 = vrot.slane %v1343, %v1349
          %v1352 = vunpack.c.l.s4 1966171168
          %v1353 = vunpack.c.0.s8 %v1352
          %v1354 = vlaneseq
          %v1355 = vshrl.u32 %v1354, 7
          %v1356 = vsub.s32 %v1353, %v1355
          %v1357 = vrot.slane %v1350, %v1356
          %v1359 = vadd.f32 %v1230, %v1357
          %1360 = vst.msk [vmem:[#allocation4] sm:$0x3] %vm1228, %v1359
          // Predicated region
          $region69: #{tpu_custom_call.1} parent=63 // pred_check
            %p1361 = pneg %p1085
          $region70: #{tpu_custom_call.1} parent=63 // pred_check_branch
            %1363 = sbr.rel (%p1361) target = $region72
          $region71: #{tpu_custom_call.1} parent=63 // pred_region
            %v1364 = vld [vmem:[#allocation3] sm:$0x3]
            %v1365 = vmul.f32 %v1364, 0.005
            %v1366 = vld [vmem:[#allocation4] sm:$0x3]
            %v1367 = vmul.f32 %v1366, 0.005
            %v1368 = vmul.f32 %v1365, %v1365
            %v1369 = vsub.f32 %v1367, %v1368
            %v1370 = vmax.f32 %v1369, 0.0
            %v1371 = vld [vmem:[%s3] sm:$0x3]
            %v1372 = vadd.f32 %v1370, 1e-05
            %v1373 = vrsqrt.pop %v1372
            %v1374 = vmul.f32 %v1371, %v1373
            %1375 = vst.msk [vmem:[#allocation5] sm:$0x3] %vm1228, %v1374
            %v1376 = vld [vmem:[%s4] sm:$0x3]
            %v1377 = vadd.f32 %v357, %v1365
            %v1378 = vmul.f32 %v1377, %v1374
            %v1379 = vsub.f32 %v1376, %v1378
            %1380 = vst.msk [vmem:[#allocation6] sm:$0x3] %vm1228, %v1379
          $region72: #{tpu_custom_call.1} parent=63 // pred_fallthru
            _
        $region64: #{tpu_custom_call.1} parent=47 // pred_fallthru
          _
        %p1381 = scmp.eq.s32.totalorder %s29, 1
        // Predicated region
        $region73: #{tpu_custom_call.1} parent=47 // pred_check
          %p1382 = pneg %p1381
        $region74: #{tpu_custom_call.1} parent=47 // pred_check_branch
          %1384 = sbr.rel (%p1382) target = $region76
        $region75: #{tpu_custom_call.1} parent=47 // pred_region
          %s1385 = sshra.s32 %s352, 3
          %s1386 = sand.u32 %s352, 7
          %s1387 = smul.u32 %s1385, 2
          %s1388 = smul.addr %s1387, 8
          %s1389 = scalar_lea.vmem [#allocation2], %s1388
          %v1390 = vld [vmem:[%s1389] sm:$0xff]
          %v1391 = vld [vmem:[%s1389 + $0x8] sm:$0xff]
          %v1392 = vld [vmem:[%s1389 + $0x10] sm:$0xff]
          %v1393 = vld [vmem:[%s1389 + $0x18] sm:$0xff]
          %v1394 = vld [vmem:[%s1389 + $0x20] sm:$0xff]
          %v1395 = vld [vmem:[%s1389 + $0x28] sm:$0xff]
          %v1396 = vld [vmem:[%s1389 + $0x30] sm:$0xff]
          %v1397 = vld [vmem:[%s1389 + $0x38] sm:$0xff]
          %v1398 = vld [vmem:[%s1389 + $0x40] sm:$0xff]
          %v1399 = vld [vmem:[%s1389 + $0x48] sm:$0xff]
          %v1400 = vld [vmem:[%s1389 + $0x50] sm:$0xff]
          %v1401 = vld [vmem:[%s1389 + $0x58] sm:$0xff]
          %v1402 = vld [vmem:[%s1389 + $0x60] sm:$0xff]
          %v1403 = vld [vmem:[%s1389 + $0x68] sm:$0xff]
          %v1404 = vld [vmem:[%s1389 + $0x70] sm:$0xff]
          %v1405 = vld [vmem:[%s1389 + $0x78] sm:$0xff]
          %v1406 = vld [vmem:[%s1389 + $0x80] sm:$0xff]
          %v1407 = vld [vmem:[%s1389 + $0x88] sm:$0xff]
          %v1408 = vld [vmem:[%s1389 + $0x90] sm:$0xff]
          %v1409 = vld [vmem:[%s1389 + $0x98] sm:$0xff]
          %v1410 = vld [vmem:[%s1389 + $0xa0] sm:$0xff]
          %v1411 = vld [vmem:[%s1389 + $0xa8] sm:$0xff]
          %v1412 = vld [vmem:[%s1389 + $0xb0] sm:$0xff]
          %v1413 = vld [vmem:[%s1389 + $0xb8] sm:$0xff]
          %v1414 = vld [vmem:[%s1389 + $0xc0] sm:$0xff]
          %v1415 = vld [vmem:[%s1389 + $0xc8] sm:$0xff]
          %v1416 = vld [vmem:[%s1389 + $0xd0] sm:$0xff]
          %v1417 = vld [vmem:[%s1389 + $0xd8] sm:$0xff]
          %v1418 = vld [vmem:[%s1389 + $0xe0] sm:$0xff]
          %v1419 = vld [vmem:[%s1389 + $0xe8] sm:$0xff]
          %v1420 = vld [vmem:[%s1389 + $0xf0] sm:$0xff]
          %v1421 = vld [vmem:[%s1389 + $0xf8] sm:$0xff]
          %v1422 = vld [vmem:[%s1389 + $0x100] sm:$0xff]
          %v1423 = vld [vmem:[%s1389 + $0x108] sm:$0xff]
          %v1424 = vld [vmem:[%s1389 + $0x110] sm:$0xff]
          %v1425 = vld [vmem:[%s1389 + $0x118] sm:$0xff]
          %v1426 = vld [vmem:[%s1389 + $0x120] sm:$0xff]
          %v1427 = vld [vmem:[%s1389 + $0x128] sm:$0xff]
          %v1428 = vld [vmem:[%s1389 + $0x130] sm:$0xff]
          %v1429 = vld [vmem:[%s1389 + $0x138] sm:$0xff]
          %v1430 = vld [vmem:[%s1389 + $0x140] sm:$0xff]
          %v1431 = vld [vmem:[%s1389 + $0x148] sm:$0xff]
          %v1432 = vld [vmem:[%s1389 + $0x150] sm:$0xff]
          %v1433 = vld [vmem:[%s1389 + $0x158] sm:$0xff]
          %v1434 = vld [vmem:[%s1389 + $0x160] sm:$0xff]
          %v1435 = vld [vmem:[%s1389 + $0x168] sm:$0xff]
          %v1436 = vld [vmem:[%s1389 + $0x170] sm:$0xff]
          %v1437 = vld [vmem:[%s1389 + $0x178] sm:$0xff]
          %v1438 = vld [vmem:[%s1389 + $0x180] sm:$0xff]
          %v1439 = vld [vmem:[%s1389 + $0x188] sm:$0xff]
          %v1440 = vld [vmem:[#allocation5] sm:$0x3]
          %v1442 = vlaneseq
          %v1443 = vshrl.u32 %v1442, 7
          %v1444 = vsub.s32 0, %v1443
          %v1445 = vrot.slane %v1440, %v1444
          %v1446 = vlaneseq
          %v1447 = vshrl.u32 %v1446, 7
          %v1448 = vsub.s32 1, %v1447
          %v1449 = vrot.slane %v1440, %v1448
          %v1452 = vmul.f32 %v1390, %v1445
          %v1453 = vmul.f32 %v1391, %v1449
          %v1454 = vmul.f32 %v1392, %v1445
          %v1455 = vmul.f32 %v1393, %v1449
          %v1456 = vmul.f32 %v1394, %v1445
          %v1457 = vmul.f32 %v1395, %v1449
          %v1458 = vmul.f32 %v1396, %v1445
          %v1459 = vmul.f32 %v1397, %v1449
          %v1460 = vmul.f32 %v1398, %v1445
          %v1461 = vmul.f32 %v1399, %v1449
          %v1462 = vmul.f32 %v1400, %v1445
          %v1463 = vmul.f32 %v1401, %v1449
          %v1464 = vmul.f32 %v1402, %v1445
          %v1465 = vmul.f32 %v1403, %v1449
          %v1466 = vmul.f32 %v1404, %v1445
          %v1467 = vmul.f32 %v1405, %v1449
          %v1468 = vmul.f32 %v1406, %v1445
          %v1469 = vmul.f32 %v1407, %v1449
          %v1470 = vmul.f32 %v1408, %v1445
          %v1471 = vmul.f32 %v1409, %v1449
          %v1472 = vmul.f32 %v1410, %v1445
          %v1473 = vmul.f32 %v1411, %v1449
          %v1474 = vmul.f32 %v1412, %v1445
          %v1475 = vmul.f32 %v1413, %v1449
          %v1476 = vmul.f32 %v1414, %v1445
          %v1477 = vmul.f32 %v1415, %v1449
          %v1478 = vmul.f32 %v1416, %v1445
          %v1479 = vmul.f32 %v1417, %v1449
          %v1480 = vmul.f32 %v1418, %v1445
          %v1481 = vmul.f32 %v1419, %v1449
          %v1482 = vmul.f32 %v1420, %v1445
          %v1483 = vmul.f32 %v1421, %v1449
          %v1484 = vmul.f32 %v1422, %v1445
          %v1485 = vmul.f32 %v1423, %v1449
          %v1486 = vmul.f32 %v1424, %v1445
          %v1487 = vmul.f32 %v1425, %v1449
          %v1488 = vmul.f32 %v1426, %v1445
          %v1489 = vmul.f32 %v1427, %v1449
          %v1490 = vmul.f32 %v1428, %v1445
          %v1491 = vmul.f32 %v1429, %v1449
          %v1492 = vmul.f32 %v1430, %v1445
          %v1493 = vmul.f32 %v1431, %v1449
          %v1494 = vmul.f32 %v1432, %v1445
          %v1495 = vmul.f32 %v1433, %v1449
          %v1496 = vmul.f32 %v1434, %v1445
          %v1497 = vmul.f32 %v1435, %v1449
          %v1498 = vmul.f32 %v1436, %v1445
          %v1499 = vmul.f32 %v1437, %v1449
          %v1500 = vmul.f32 %v1438, %v1445
          %v1501 = vmul.f32 %v1439, %v1449
          %v1502 = vld [vmem:[#allocation6] sm:$0x3]
          %v1504 = vlaneseq
          %v1505 = vshrl.u32 %v1504, 7
          %v1506 = vsub.s32 0, %v1505
          %v1507 = vrot.slane %v1502, %v1506
          %v1508 = vlaneseq
          %v1509 = vshrl.u32 %v1508, 7
          %v1510 = vsub.s32 1, %v1509
          %v1511 = vrot.slane %v1502, %v1510
          %v1514 = vadd.f32 %v1452, %v1507
          %v1515 = vadd.f32 %v1453, %v1511
          %v1516 = vadd.f32 %v1454, %v1507
          %v1517 = vadd.f32 %v1455, %v1511
          %v1518 = vadd.f32 %v1456, %v1507
          %v1519 = vadd.f32 %v1457, %v1511
          %v1520 = vadd.f32 %v1458, %v1507
          %v1521 = vadd.f32 %v1459, %v1511
          %v1522 = vadd.f32 %v1460, %v1507
          %v1523 = vadd.f32 %v1461, %v1511
          %v1524 = vadd.f32 %v1462, %v1507
          %v1525 = vadd.f32 %v1463, %v1511
          %v1526 = vadd.f32 %v1464, %v1507
          %v1527 = vadd.f32 %v1465, %v1511
          %v1528 = vadd.f32 %v1466, %v1507
          %v1529 = vadd.f32 %v1467, %v1511
          %v1530 = vadd.f32 %v1468, %v1507
          %v1531 = vadd.f32 %v1469, %v1511
          %v1532 = vadd.f32 %v1470, %v1507
          %v1533 = vadd.f32 %v1471, %v1511
          %v1534 = vadd.f32 %v1472, %v1507
          %v1535 = vadd.f32 %v1473, %v1511
          %v1536 = vadd.f32 %v1474, %v1507
          %v1537 = vadd.f32 %v1475, %v1511
          %v1538 = vadd.f32 %v1476, %v1507
          %v1539 = vadd.f32 %v1477, %v1511
          %v1540 = vadd.f32 %v1478, %v1507
          %v1541 = vadd.f32 %v1479, %v1511
          %v1542 = vadd.f32 %v1480, %v1507
          %v1543 = vadd.f32 %v1481, %v1511
          %v1544 = vadd.f32 %v1482, %v1507
          %v1545 = vadd.f32 %v1483, %v1511
          %v1546 = vadd.f32 %v1484, %v1507
          %v1547 = vadd.f32 %v1485, %v1511
          %v1548 = vadd.f32 %v1486, %v1507
          %v1549 = vadd.f32 %v1487, %v1511
          %v1550 = vadd.f32 %v1488, %v1507
          %v1551 = vadd.f32 %v1489, %v1511
          %v1552 = vadd.f32 %v1490, %v1507
          %v1553 = vadd.f32 %v1491, %v1511
          %v1554 = vadd.f32 %v1492, %v1507
          %v1555 = vadd.f32 %v1493, %v1511
          %v1556 = vadd.f32 %v1494, %v1507
          %v1557 = vadd.f32 %v1495, %v1511
          %v1558 = vadd.f32 %v1496, %v1507
          %v1559 = vadd.f32 %v1497, %v1511
          %v1560 = vadd.f32 %v1498, %v1507
          %v1561 = vadd.f32 %v1499, %v1511
          %v1562 = vadd.f32 %v1500, %v1507
          %v1563 = vadd.f32 %v1501, %v1511
          %v1564 = vmax.f32 %v1514, 0.0
          %v1565 = vmax.f32 %v1515, 0.0
          %v1566 = vmax.f32 %v1516, 0.0
          %v1567 = vmax.f32 %v1517, 0.0
          %v1568 = vmax.f32 %v1518, 0.0
          %v1569 = vmax.f32 %v1519, 0.0
          %v1570 = vmax.f32 %v1520, 0.0
          %v1571 = vmax.f32 %v1521, 0.0
          %v1572 = vmax.f32 %v1522, 0.0
          %v1573 = vmax.f32 %v1523, 0.0
          %v1574 = vmax.f32 %v1524, 0.0
          %v1575 = vmax.f32 %v1525, 0.0
          %v1576 = vmax.f32 %v1526, 0.0
          %v1577 = vmax.f32 %v1527, 0.0
          %v1578 = vmax.f32 %v1528, 0.0
          %v1579 = vmax.f32 %v1529, 0.0
          %v1580 = vmax.f32 %v1530, 0.0
          %v1581 = vmax.f32 %v1531, 0.0
          %v1582 = vmax.f32 %v1532, 0.0
          %v1583 = vmax.f32 %v1533, 0.0
          %v1584 = vmax.f32 %v1534, 0.0
          %v1585 = vmax.f32 %v1535, 0.0
          %v1586 = vmax.f32 %v1536, 0.0
          %v1587 = vmax.f32 %v1537, 0.0
          %v1588 = vmax.f32 %v1538, 0.0
          %v1589 = vmax.f32 %v1539, 0.0
          %v1590 = vmax.f32 %v1540, 0.0
          %v1591 = vmax.f32 %v1541, 0.0
          %v1592 = vmax.f32 %v1542, 0.0
          %v1593 = vmax.f32 %v1543, 0.0
          %v1594 = vmax.f32 %v1544, 0.0
          %v1595 = vmax.f32 %v1545, 0.0
          %v1596 = vmax.f32 %v1546, 0.0
          %v1597 = vmax.f32 %v1547, 0.0
          %v1598 = vmax.f32 %v1548, 0.0
          %v1599 = vmax.f32 %v1549, 0.0
          %v1600 = vmax.f32 %v1550, 0.0
          %v1601 = vmax.f32 %v1551, 0.0
          %v1602 = vmax.f32 %v1552, 0.0
          %v1603 = vmax.f32 %v1553, 0.0
          %v1604 = vmax.f32 %v1554, 0.0
          %v1605 = vmax.f32 %v1555, 0.0
          %v1606 = vmax.f32 %v1556, 0.0
          %v1607 = vmax.f32 %v1557, 0.0
          %v1608 = vmax.f32 %v1558, 0.0
          %v1609 = vmax.f32 %v1559, 0.0
          %v1610 = vmax.f32 %v1560, 0.0
          %v1611 = vmax.f32 %v1561, 0.0
          %v1612 = vmax.f32 %v1562, 0.0
          %v1613 = vmax.f32 %v1563, 0.0
          %v1614 = vld [vmem:[#allocation12] sm:$0xff]
          %v1615 = vld [vmem:[#allocation12 + $0x8] sm:$0xff]
          %v1616 = vld [vmem:[#allocation12 + $0x10] sm:$0xff]
          %v1617 = vld [vmem:[#allocation12 + $0x18] sm:$0xff]
          %v1618 = vld [vmem:[#allocation12 + $0x20] sm:$0xff]
          %v1619 = vld [vmem:[#allocation12 + $0x28] sm:$0xff]
          %v1620 = vld [vmem:[#allocation12 + $0x30] sm:$0xff]
          %v1621 = vld [vmem:[#allocation12 + $0x38] sm:$0xff]
          %v1622 = vld [vmem:[#allocation12 + $0x40] sm:$0xff]
          %v1623 = vld [vmem:[#allocation12 + $0x48] sm:$0xff]
          %v1624 = vld [vmem:[#allocation12 + $0x50] sm:$0xff]
          %v1625 = vld [vmem:[#allocation12 + $0x58] sm:$0xff]
          %v1626 = vld [vmem:[#allocation12 + $0x60] sm:$0xff]
          %v1627 = vld [vmem:[#allocation12 + $0x68] sm:$0xff]
          %v1628 = vld [vmem:[#allocation12 + $0x70] sm:$0xff]
          %v1629 = vld [vmem:[#allocation12 + $0x78] sm:$0xff]
          %v1630 = vld [vmem:[#allocation12 + $0x80] sm:$0xff]
          %v1631 = vld [vmem:[#allocation12 + $0x88] sm:$0xff]
          %v1632 = vld [vmem:[#allocation12 + $0x90] sm:$0xff]
          %v1633 = vld [vmem:[#allocation12 + $0x98] sm:$0xff]
          %v1634 = vld [vmem:[#allocation12 + $0xa0] sm:$0xff]
          %v1635 = vld [vmem:[#allocation12 + $0xa8] sm:$0xff]
          %v1636 = vld [vmem:[#allocation12 + $0xb0] sm:$0xff]
          %v1637 = vld [vmem:[#allocation12 + $0xb8] sm:$0xff]
          %v1638 = vld [vmem:[#allocation12 + $0xc0] sm:$0xff]
          %v1639 = vld [vmem:[#allocation12 + $0xc8] sm:$0xff]
          %v1640 = vld [vmem:[#allocation12 + $0xd0] sm:$0xff]
          %v1641 = vld [vmem:[#allocation12 + $0xd8] sm:$0xff]
          %v1642 = vld [vmem:[#allocation12 + $0xe0] sm:$0xff]
          %v1643 = vld [vmem:[#allocation12 + $0xe8] sm:$0xff]
          %v1644 = vld [vmem:[#allocation12 + $0xf0] sm:$0xff]
          %v1645 = vld [vmem:[#allocation12 + $0xf8] sm:$0xff]
          %v1646 = vld [vmem:[%s6] sm:$0x1]
          %v1648 = vlaneseq
          %v1649 = vshrl.u32 %v1648, 7
          %v1650 = vsub.s32 0, %v1649
          %v1651 = vrot.slane %v1646, %v1650
          %1653 = vmatprep.subr.mxu0 0.0
          %1654 = vmatpush1.msra.mxu0 %v1614
          %1655 = vmatprep.subr.mxu0 0.0
          %1656 = vmatpush1.msra.mxu0 %v1615
          %1657 = vmatprep.subr.mxu0 0.0
          %1658 = vmatpush1.msra.mxu0 %v1616
          %1659 = vmatprep.subr.mxu0 0.0
          %1660 = vmatpush1.msra.mxu0 %v1617
          %1661 = vmatprep.subr.mxu0 0.0
          %1662 = vmatpush1.msra.mxu0 %v1618
          %1663 = vmatprep.subr.mxu0 0.0
          %1664 = vmatpush1.msra.mxu0 %v1619
          %1665 = vmatprep.subr.mxu0 0.0
          %1666 = vmatpush1.msra.mxu0 %v1620
          %1667 = vmatprep.subr.mxu0 0.0
          %1668 = vmatpush1.msra.mxu0 %v1621
          %1669 = vmatprep.subr.mxu0 0.0
          %1670 = vmatpush1.msra.mxu0 %v1622
          %1671 = vmatprep.subr.mxu0 0.0
          %1672 = vmatpush1.msra.mxu0 %v1623
          %1673 = vmatprep.subr.mxu0 0.0
          %1674 = vmatpush1.msra.mxu0 %v1624
          %1675 = vmatprep.subr.mxu0 0.0
          %1676 = vmatpush1.msra.mxu0 %v1625
          %1677 = vmatprep.subr.mxu0 0.0
          %1678 = vmatpush1.msra.mxu0 %v1626
          %1679 = vmatprep.subr.mxu0 0.0
          %1680 = vmatpush1.msra.mxu0 %v1627
          %1681 = vmatprep.subr.mxu0 0.0
          %1682 = vmatpush1.msra.mxu0 %v1628
          %1683 = vmatprep.subr.mxu0 0.0
          %1684 = vmatpush1.msra.mxu0 %v1629
          %1685 = vmatprep.subr.mxu0 0.0
          %1686 = vmatpush1.msra.mxu0 %v1630
          %1687 = vmatprep.subr.mxu0 0.0
          %1688 = vmatpush1.msra.mxu0 %v1631
          %1689 = vmatprep.subr.mxu0 0.0
          %1690 = vmatpush1.msra.mxu0 %v1632
          %1691 = vmatprep.subr.mxu0 0.0
          %1692 = vmatpush1.msra.mxu0 %v1633
          %1693 = vmatprep.subr.mxu0 0.0
          %1694 = vmatpush1.msra.mxu0 %v1634
          %1695 = vmatprep.subr.mxu0 0.0
          %1696 = vmatpush1.msra.mxu0 %v1635
          %1697 = vmatprep.subr.mxu0 0.0
          %1698 = vmatpush1.msra.mxu0 %v1636
          %1699 = vmatprep.subr.mxu0 0.0
          %1700 = vmatpush1.msra.mxu0 %v1637
          %1701 = vmatprep.subr.mxu0 0.0
          %1702 = vmatpush1.msra.mxu0 %v1638
          %1703 = vmatprep.subr.mxu0 0.0
          %1704 = vmatpush1.msra.mxu0 %v1639
          %1705 = vmatprep.subr.mxu0 0.0
          %1706 = vmatpush1.msra.mxu0 %v1640
          %1707 = vmatprep.subr.mxu0 0.0
          %1708 = vmatpush1.msra.mxu0 %v1641
          %1709 = vmatprep.subr.mxu0 0.0
          %1710 = vmatpush1.msra.mxu0 %v1642
          %1711 = vmatprep.subr.mxu0 0.0
          %1712 = vmatpush1.msra.mxu0 %v1643
          %1713 = vmatprep.subr.mxu0 0.0
          %1714 = vmatpush1.msra.mxu0 %v1644
          %1715 = vmatprep.subr.mxu0 0.0
          %1716 = vmatpush1.msra.mxu0 %v1645
          %1717 = vmatprep.mubr.f32.mxu0 %v1565
          %1718 = vmatmul.mubr.f32.gmra.mrb[0].mxu0 %v1564
          %v1719 = vpop.f32.mrb[0].mxu0
          %v1720 = vadd.f32 %v1651, %v1719
          %v1721 = vpop.f32.mrb[0].mxu0
          %1722 = vmatprep.mubr.f32.mxu0 %v1567
          %1723 = vmatmul.mubr.f32.gmra.mrb[0].mxu0 %v1566
          %v1724 = vpop.f32.mrb[0].mxu0
          %v1725 = vadd.f32 %v1651, %v1724
          %v1726 = vpop.f32.mrb[0].mxu0
          %1727 = vmatprep.mubr.f32.mxu0 %v1569
          %1728 = vmatmul.mubr.f32.gmra.mrb[0].mxu0 %v1568
          %v1729 = vpop.f32.mrb[0].mxu0
          %v1730 = vadd.f32 %v1651, %v1729
          %v1731 = vpop.f32.mrb[0].mxu0
          %1732 = vmatprep.mubr.f32.mxu0 %v1571
          %1733 = vmatmul.mubr.f32.gmra.mrb[0].mxu0 %v1570
          %v1734 = vpop.f32.mrb[0].mxu0
          %v1735 = vadd.f32 %v1651, %v1734
          %v1736 = vpop.f32.mrb[0].mxu0
          %1737 = vmatprep.mubr.f32.mxu0 %v1573
          %1738 = vmatmul.mubr.f32.gmra.mrb[0].mxu0 %v1572
          %v1739 = vpop.f32.mrb[0].mxu0
          %v1740 = vadd.f32 %v1651, %v1739
          %v1741 = vpop.f32.mrb[0].mxu0
          %1742 = vmatprep.mubr.f32.mxu0 %v1575
          %1743 = vmatmul.mubr.f32.gmra.mrb[0].mxu0 %v1574
          %v1744 = vpop.f32.mrb[0].mxu0
          %v1745 = vadd.f32 %v1651, %v1744
          %v1746 = vpop.f32.mrb[0].mxu0
          %1747 = vmatprep.mubr.f32.mxu0 %v1577
          %1748 = vmatmul.mubr.f32.gmra.mrb[0].mxu0 %v1576
          %v1749 = vpop.f32.mrb[0].mxu0
          %v1750 = vadd.f32 %v1651, %v1749
          %v1751 = vpop.f32.mrb[0].mxu0
          %1752 = vmatprep.mubr.f32.mxu0 %v1579
          %1753 = vmatmul.mubr.f32.gmra.mrb[0].mxu0 %v1578
          %v1754 = vpop.f32.mrb[0].mxu0
          %v1755 = vadd.f32 %v1651, %v1754
          %v1756 = vpop.f32.mrb[0].mxu0
          %1757 = vmatprep.mubr.f32.mxu0 %v1581
          %1758 = vmatmul.mubr.f32.gmra.mrb[0].mxu0 %v1580
          %v1759 = vpop.f32.mrb[0].mxu0
          %v1760 = vadd.f32 %v1651, %v1759
          %v1761 = vpop.f32.mrb[0].mxu0
          %1762 = vmatprep.mubr.f32.mxu0 %v1583
          %1763 = vmatmul.mubr.f32.gmra.mrb[0].mxu0 %v1582
          %v1764 = vpop.f32.mrb[0].mxu0
          %v1765 = vadd.f32 %v1651, %v1764
          %v1766 = vpop.f32.mrb[0].mxu0
          %1767 = vmatprep.mubr.f32.mxu0 %v1585
          %1768 = vmatmul.mubr.f32.gmra.mrb[0].mxu0 %v1584
          %v1769 = vpop.f32.mrb[0].mxu0
          %v1770 = vadd.f32 %v1651, %v1769
          %v1771 = vpop.f32.mrb[0].mxu0
          %1772 = vmatprep.mubr.f32.mxu0 %v1587
          %1773 = vmatmul.mubr.f32.gmra.mrb[0].mxu0 %v1586
          %v1774 = vpop.f32.mrb[0].mxu0
          %v1775 = vadd.f32 %v1651, %v1774
          %v1776 = vpop.f32.mrb[0].mxu0
          %1777 = vmatprep.mubr.f32.mxu0 %v1589
          %1778 = vmatmul.mubr.f32.gmra.mrb[0].mxu0 %v1588
          %v1779 = vpop.f32.mrb[0].mxu0
          %v1780 = vadd.f32 %v1651, %v1779
          %v1781 = vpop.f32.mrb[0].mxu0
          %1782 = vmatprep.mubr.f32.mxu0 %v1591
          %1783 = vmatmul.mubr.f32.gmra.mrb[0].mxu0 %v1590
          %v1784 = vpop.f32.mrb[0].mxu0
          %v1785 = vadd.f32 %v1651, %v1784
          %v1786 = vpop.f32.mrb[0].mxu0
          %1787 = vmatprep.mubr.f32.mxu0 %v1593
          %1788 = vmatmul.mubr.f32.gmra.mrb[0].mxu0 %v1592
          %v1789 = vpop.f32.mrb[0].mxu0
          %v1790 = vadd.f32 %v1651, %v1789
          %v1791 = vpop.f32.mrb[0].mxu0
          %1792 = vmatprep.mubr.f32.mxu0 %v1595
          %1793 = vmatmul.mubr.f32.gmra.mrb[0].mxu0 %v1594
          %v1794 = vpop.f32.mrb[0].mxu0
          %v1795 = vadd.f32 %v1651, %v1794
          %v1796 = vpop.f32.mrb[0].mxu0
          %1797 = vmatprep.mubr.f32.mxu0 %v1597
          %1798 = vmatmul.mubr.f32.gmra.mrb[0].mxu0 %v1596
          %v1799 = vpop.f32.mrb[0].mxu0
          %v1800 = vadd.f32 %v1651, %v1799
          %v1801 = vpop.f32.mrb[0].mxu0
          %1802 = vmatprep.mubr.f32.mxu0 %v1599
          %1803 = vmatmul.mubr.f32.gmra.mrb[0].mxu0 %v1598
          %v1804 = vpop.f32.mrb[0].mxu0
          %v1805 = vadd.f32 %v1651, %v1804
          %v1806 = vpop.f32.mrb[0].mxu0
          %1807 = vmatprep.mubr.f32.mxu0 %v1601
          %1808 = vmatmul.mubr.f32.gmra.mrb[0].mxu0 %v1600
          %v1809 = vpop.f32.mrb[0].mxu0
          %v1810 = vadd.f32 %v1651, %v1809
          %v1811 = vpop.f32.mrb[0].mxu0
          %1812 = vmatprep.mubr.f32.mxu0 %v1603
          %1813 = vmatmul.mubr.f32.gmra.mrb[0].mxu0 %v1602
          %v1814 = vpop.f32.mrb[0].mxu0
          %v1815 = vadd.f32 %v1651, %v1814
          %v1816 = vpop.f32.mrb[0].mxu0
          %1817 = vmatprep.mubr.f32.mxu0 %v1605
          %1818 = vmatmul.mubr.f32.gmra.mrb[0].mxu0 %v1604
          %v1819 = vpop.f32.mrb[0].mxu0
          %v1820 = vadd.f32 %v1651, %v1819
          %v1821 = vpop.f32.mrb[0].mxu0
          %1822 = vmatprep.mubr.f32.mxu0 %v1607
          %1823 = vmatmul.mubr.f32.gmra.mrb[0].mxu0 %v1606
          %v1824 = vpop.f32.mrb[0].mxu0
          %v1825 = vadd.f32 %v1651, %v1824
          %v1826 = vpop.f32.mrb[0].mxu0
          %1827 = vmatprep.mubr.f32.mxu0 %v1609
          %1828 = vmatmul.mubr.f32.gmra.mrb[0].mxu0 %v1608
          %v1829 = vpop.f32.mrb[0].mxu0
          %v1830 = vadd.f32 %v1651, %v1829
          %v1831 = vpop.f32.mrb[0].mxu0
          %1832 = vmatprep.mubr.f32.mxu0 %v1611
          %1833 = vmatmul.mubr.f32.gmra.mrb[0].mxu0 %v1610
          %v1834 = vpop.f32.mrb[0].mxu0
          %v1835 = vadd.f32 %v1651, %v1834
          %v1836 = vpop.f32.mrb[0].mxu0
          %1837 = vmatprep.mubr.f32.mxu0 %v1613
          %1838 = vmatmul.mubr.f32.gmra.mrb[0].mxu0 %v1612
          %v1839 = vpop.f32.mrb[0].mxu0
          %v1840 = vadd.f32 %v1651, %v1839
          %v1841 = vpop.f32.mrb[0].mxu0
          %1842 = vdwg.mxu0
          %1843 = vst [vmem:[%s346] sm:$0xff] %v1720
          %1844 = vst [vmem:[%s346 + $0x8] sm:$0xff] %v1725
          %1845 = vst [vmem:[%s346 + $0x10] sm:$0xff] %v1730
          %1846 = vst [vmem:[%s346 + $0x18] sm:$0xff] %v1735
          %1847 = vst [vmem:[%s346 + $0x20] sm:$0xff] %v1740
          %1848 = vst [vmem:[%s346 + $0x28] sm:$0xff] %v1745
          %1849 = vst [vmem:[%s346 + $0x30] sm:$0xff] %v1750
          %1850 = vst [vmem:[%s346 + $0x38] sm:$0xff] %v1755
          %1851 = vst [vmem:[%s346 + $0x40] sm:$0xff] %v1760
          %1852 = vst [vmem:[%s346 + $0x48] sm:$0xff] %v1765
          %1853 = vst [vmem:[%s346 + $0x50] sm:$0xff] %v1770
          %1854 = vst [vmem:[%s346 + $0x58] sm:$0xff] %v1775
          %1855 = vst [vmem:[%s346 + $0x60] sm:$0xff] %v1780
          %1856 = vst [vmem:[%s346 + $0x68] sm:$0xff] %v1785
          %1857 = vst [vmem:[%s346 + $0x70] sm:$0xff] %v1790
          %1858 = vst [vmem:[%s346 + $0x78] sm:$0xff] %v1795
          %1859 = vst [vmem:[%s346 + $0x80] sm:$0xff] %v1800
          %1860 = vst [vmem:[%s346 + $0x88] sm:$0xff] %v1805
          %1861 = vst [vmem:[%s346 + $0x90] sm:$0xff] %v1810
          %1862 = vst [vmem:[%s346 + $0x98] sm:$0xff] %v1815
          %1863 = vst [vmem:[%s346 + $0xa0] sm:$0xff] %v1820
          %1864 = vst [vmem:[%s346 + $0xa8] sm:$0xff] %v1825
          %1865 = vst [vmem:[%s346 + $0xb0] sm:$0xff] %v1830
          %1866 = vst [vmem:[%s346 + $0xb8] sm:$0xff] %v1835
          %1867 = vst [vmem:[%s346 + $0xc0] sm:$0xff] %v1840
        $region76: #{tpu_custom_call.1} parent=47 // pred_fallthru
          _
        %s1868 = sand.u32 %s203, 1
        %s1869 = scalar_lea.sflag [#allocation9], %s1868
        %s1870 = sand.u32 %s203, 1
        %s1871 = smul.addr %s1870, 200
        %s1872 = scalar_lea.vmem [#allocation13], %s1871
        // Predicated region
        $region77: #{tpu_custom_call.1} parent=47 // pred_check
          %p1873 = pneg %p213
        $region78: #{tpu_custom_call.1} parent=47 // pred_check_branch
          %1875 = sbr.rel (%p1873) target = $region80
        $region79: #{tpu_custom_call.1} parent=47 // pred_region
          %s1876 = smul.u32 %s29, %s30
          %s1877 = smul.u32 25, %s1876
          %s1879 = ssub.s32 3200, 3200
          %1880 = vsyncadd %s1869, %s1879
          %s1881 = smul.addr %s1877, 128
          %s1882 = scalar_lea.hbm %s7, %s1881
          %s1883 = sshll.u32 %s1872, 4
          %s1884 = int_to_ptr.vmem [resolvable:$true] %s1883
          %1889 = dma.vmem_to_hbm [thread:$0]  %s1884, 3200, %s1882, %s1869, 128, 128, 8
        $region80: #{tpu_custom_call.1} parent=47 // pred_fallthru
          _
      $region48: #{tpu_custom_call.1} parent=5 // pred_fallthru
        _
      %p1890 = scmp.le.s32.totalorder 2, %s20
      // Predicated region
      $region81: #{tpu_custom_call.1} parent=5 // pred_check
        %p1891 = pneg %p1890
      $region82: #{tpu_custom_call.1} parent=5 // pred_check_branch
        %1893 = sbr.rel (%p1891) target = $region84
      $region83: #{tpu_custom_call.1} parent=5 // pred_region
        %s1894 = ssub.s32 %s20, 2
        // Predicated region
        $region85: #{tpu_custom_call.1} parent=83 // pred_check
          %p1895 = pneg %p219
        $region86: #{tpu_custom_call.1} parent=83 // pred_check_branch
          %1897 = sbr.rel (%p1895) target = $region88
        $region87: #{tpu_custom_call.1} parent=83 // pred_region
          %s1898 = sand.u32 %s204, 1
          %s1899 = scalar_lea.sflag [#allocation9], %s1898
          %s1900 = sand.u32 %s204, 1
          %s1901 = smul.addr %s1900, 200
          %s1902 = scalar_lea.vmem [#allocation13], %s1901
          %1903 = dma.done %s1899, 3200
        $region88: #{tpu_custom_call.1} parent=83 // pred_fallthru
          _
      $region84: #{tpu_custom_call.1} parent=5 // pred_fallthru
        _
    $region6: #{tpu_custom_call.1} parent=1 // loop_footer
      %s24 = sadd.s32 1, %s20
    $region7: #{tpu_custom_call.1} parent=1 // loop_footer_branch
      %19 = sbr.rel target = $region3
    $region8: #{tpu_custom_call.1} parent=1 // loop_exit
      _
    %1904 = vsyncpa [#allocation8], 1
    %s1905 = scalar_lea.sflag [#allocation8], 1
    %1906 = vsyncpa %s1905, 1
    %1907 = vsyncpa [#allocation11], 1
    %1908 = vsyncpa [#allocation9], 1
    %s1909 = scalar_lea.sflag [#allocation9], 1
    %1910 = vsyncpa %s1909, 1

</llo_original>
